<compile_context>
chip_gen: v5e
topology: v5e:2x2
jax: 0.10.0
libtpu: 0.0.40
codegen_flags: <defaults>
</compile_context>

<pallas_src>
import jax
import jax.numpy as jnp
from jax.experimental import pallas as pl
from jax.experimental.pallas import tpu as pltpu

H = 64  # h_n1


def _make_dnn1_kernel(G, H):
    def dnn1_kernel(x_ref, p_ref, wh_ref, o_ref):
        # x_ref : (2*G, tc)       rows [2g, 2g+1] = (x0, x1) of batch group g
        # p_ref : (G*H, 9)  f32   columns = [w1[:,0], w1[:,1], b1..b5, w6, b6],
        #                         tiled G times along the sublane axis
        # wh_ref: (4, G*H, G*H) bf16  block-diag(W_l^T, ..., W_l^T)
        # o_ref : (G, tc)         lane-dense output tile (row g = group g)
        tc = x_ref.shape[1]

        # ---- Layer 1: per-group rank-1 broadcast FMAs on the VPU (K=2, skip MXU).
        hs = []
        for g in range(G):
            x0 = x_ref[2 * g:2 * g + 1, :]        # (1, tc)
            x1 = x_ref[2 * g + 1:2 * g + 2, :]    # (1, tc)
            r0 = g * H
            hs.append(p_ref[r0:r0 + H, 0:1] * x0
                      + p_ref[r0:r0 + H, 1:2] * x1
                      + p_ref[r0:r0 + H, 2:3])    # (H, tc)
        h = jnp.maximum(jnp.concatenate(hs, axis=0), 0.0)   # (G*H, tc) f32

        # ---- Layers 2..5: block-diagonal (G*H, G*H) bf16 matmuls, f32 accumulate.
        for l in range(4):
            h = jnp.dot(wh_ref[l], h.astype(jnp.bfloat16),
                        preferred_element_type=jnp.float32)   # (G*H, tc) f32
            h = jnp.maximum(h + p_ref[:, 3 + l:4 + l], 0.0)

        # ---- Layer 6 (out=1): f32 VPU multiply + per-group sublane reduce (XLU).
        prod = h * p_ref[:, 7:8]                               # (G*H, tc)
        out = jnp.sum(prod.reshape(G, H, tc), axis=1)          # (G, tc)
        o_ref[...] = out + p_ref[0:G, 8:9]                     # + b6

    return dnn1_kernel


def dnn1_forward(x, params, *, tm=2048, G=4):
    """x: (N, 2) float32. params: list of (W (in,out), b (out,)) tuples.
    Returns (N, 1) float32 matching the PyTorch DNN1 forward (bf16 MXU inputs
    for the four 64x64 hidden layers, f32 everywhere else)."""
    N, fin = x.shape
    assert fin == 2
    assert G >= 1
    (w1, b1), (w2, b2), (w3, b3), (w4, b4), (w5, b5), (w6, b6) = params

    # --- Tile-size selection: tm must be a multiple of 128*G (lane-dense per
    # group).  Cap tm so the grid keeps >=2 steps when possible (v7x: 2 TCs
    # share the "parallel" grid axis).
    unit = 128 * G
    n_units = pl.cdiv(N, unit)
    units_per_tile = max(1, min(max(tm // unit, 1), pl.cdiv(n_units, 2)))
    tm = units_per_tile * unit
    tc = tm // G
    grid_n = pl.cdiv(N, tm)
    n_pad = grid_n * tm

    # --- Input packing: batch split into G groups per tile, batch on lanes.
    # x_packed[2g+k, i*tc + j] = x[i*tm + g*tc + j, k]
    x_pad = jnp.zeros((n_pad, 2), jnp.float32).at[:N].set(x.astype(jnp.float32))
    x_packed = (x_pad.reshape(grid_n, G, tc, 2)
                .transpose(1, 3, 0, 2)
                .reshape(2 * G, grid_n * tc))

    # --- Packed small parameters (f32), tiled per group along sublanes.
    p_small = jnp.stack(
        [w1[0], w1[1], b1, b2, b3, b4, b5, w6[:, 0],
         jnp.full((H,), b6[0], jnp.float32)], axis=1).astype(jnp.float32)  # (H, 9)
    p_big = jnp.tile(p_small, (G, 1))                                      # (G*H, 9)

    # --- Block-diagonal transposed hidden weights, bf16 for the MXU.
    def _blockdiag(w):  # (H, H) -> (G*H, G*H)
        m = jnp.zeros((G * H, G * H), jnp.float32)
        for g in range(G):
            m = m.at[g * H:(g + 1) * H, g * H:(g + 1) * H].set(w)
        return m

    wh = jnp.stack([_blockdiag(w2.T), _blockdiag(w3.T),
                    _blockdiag(w4.T), _blockdiag(w5.T)],
                   axis=0).astype(jnp.bfloat16)                            # (4, G*H, G*H)

    out = pl.pallas_call(
        _make_dnn1_kernel(G, H),
        out_shape=jax.ShapeDtypeStruct((G, grid_n * tc), jnp.float32),
        grid_spec=pltpu.PrefetchScalarGridSpec(
            num_scalar_prefetch=0,
            grid=(grid_n,),
            in_specs=[
                # Batch tile: lane-dense, pipelined along the grid.
                pl.BlockSpec((2 * G, tc), lambda i: (0, i)),
                # Constant operands: whole array resident in VMEM (no per-step
                # double buffering).
                pl.BlockSpec(memory_space=pltpu.MemorySpace.VMEM),
                pl.BlockSpec(memory_space=pltpu.MemorySpace.VMEM),
            ],
            out_specs=pl.BlockSpec((G, tc), lambda i: (0, i)),
        ),
        compiler_params=pltpu.CompilerParams(
            dimension_semantics=("parallel",)),  # megacore-shardable on v7x
    )(x_packed, p_big, wh)

    # Un-pack: out[g, i*tc + j] -> batch index i*tm + g*tc + j.
    y = (out.reshape(G, grid_n, tc)
         .transpose(1, 0, 2)
         .reshape(n_pad))[:N]
    return y.reshape(N, 1)


def init_params(key):
    """Deterministic init mirroring nn.Linear default (uniform +/- 1/sqrt(fan_in)).
    Weights stored as (in, out)."""
    dims = [(2, H), (H, H), (H, H), (H, H), (H, H), (H, 1)]
    params = []
    for (fan_in, fan_out) in dims:
        key, kw, kb = jax.random.split(key, 3)
        bound = 1.0 / jnp.sqrt(jnp.float32(fan_in))
        W = jax.random.uniform(kw, (fan_in, fan_out), jnp.float32, -bound, bound)
        b = jax.random.uniform(kb, (fan_out,), jnp.float32, -bound, bound)
        params.append((W, b))
    return params


def dnn1_reference_f32(x, params):
    """Full-f32, highest-precision reference (original module semantics)."""
    h = x
    for i, (W, b) in enumerate(params):
        h = jnp.dot(h, W, precision=jax.lax.Precision.HIGHEST) + b
        if i < len(params) - 1:
            h = jnp.maximum(h, 0.0)
    return h


def dnn1_reference_matched(x, params):
    """Reference matching the kernel's precision: bf16 inputs on the four
    hidden matmuls (f32 accumulate), f32 layer 1 and layer 6."""
    (w1, b1), (w2, b2), (w3, b3), (w4, b4), (w5, b5), (w6, b6) = params
    h = jnp.maximum(
        jnp.dot(x, w1, precision=jax.lax.Precision.HIGHEST) + b1, 0.0)
    for (w, b) in ((w2, b2), (w3, b3), (w4, b4), (w5, b5)):
        h = jnp.dot(h.astype(jnp.bfloat16), w.astype(jnp.bfloat16),
                    preferred_element_type=jnp.float32) + b
        h = jnp.maximum(h, 0.0)
    return jnp.dot(h, w6, precision=jax.lax.Precision.HIGHEST) + b6


if __name__ == "__main__":
    key = jax.random.PRNGKey(0)
    kx, kp = jax.random.split(key)
    N = 1000  # ragged batch (not a multiple of the tile) to exercise padding
    x = jax.random.uniform(kx, (N, 2), jnp.float32)
    params = init_params(kp)

    out = dnn1_forward(x, params, tm=2048, G=4)  # -> tm auto-capped to 512, grid of 2
    out = jax.block_until_ready(out)
    assert out.shape == (N, 1)

    # Tight check vs a precision-matched reference (bf16 hidden matmul inputs).
    ref_m = dnn1_reference_matched(x, params)
    assert jnp.allclose(out, ref_m, atol=1e-4, rtol=1e-4), "mismatch vs matched-precision reference"

    # Loose sanity check vs the full-f32 module semantics (bf16 MXU inputs
    # introduce ~1e-3 level differences).
    ref_f32 = dnn1_reference_f32(x, params)
    assert float(jnp.max(jnp.abs(out - ref_f32))) < 5e-2, "excessive drift vs f32 reference"

    print("KERNEL_OK")
</pallas_src>

<mosaic_0001>
module attributes {stable_mosaic.version = 11 : i64} {
  func.func @dnn1_kernel(%arg0: i32, %arg1: memref<8x128xf32, #tpu.memory_space<vmem>>, %arg2: memref<256x9xf32, #tpu.memory_space<vmem>>, %arg3: memref<4x256x256xbf16, #tpu.memory_space<vmem>>, %arg4: memref<4x128xf32, #tpu.memory_space<vmem>>) attributes {dimension_semantics = [#tpu.dimension_semantics<parallel>], iteration_bounds = array<i64: 2>, scalar_prefetch = 0 : i64, scratch_operands = 0 : i64, tpu.core_type = #tpu.core_type<tc>, window_params = [{transform_indices = @transform_0, window_bounds = array<i64: 8, 128>}, {pipeline_mode = #tpu.pipeline_mode<synchronous>, transform_indices = @transform_1, window_bounds = array<i64: 256, 9>}, {pipeline_mode = #tpu.pipeline_mode<synchronous>, transform_indices = @transform_2, window_bounds = array<i64: 4, 256, 256>}, {transform_indices = @transform_3, window_bounds = array<i64: 4, 128>}]} {
    %c0 = arith.constant 0 : index
    %c0_0 = arith.constant 0 : index
    %0 = vector.load %arg1[%c0, %c0_0] : memref<8x128xf32, #tpu.memory_space<vmem>>, vector<1x128xf32>
    %c1 = arith.constant 1 : index
    %c0_1 = arith.constant 0 : index
    %1 = vector.load %arg1[%c1, %c0_1] : memref<8x128xf32, #tpu.memory_space<vmem>>, vector<1x128xf32>
    %c0_2 = arith.constant 0 : index
    %c0_3 = arith.constant 0 : index
    %2 = vector.load %arg2[%c0_2, %c0_3] : memref<256x9xf32, #tpu.memory_space<vmem>>, vector<64x1xf32>
    %3 = vector.broadcast %2 : vector<64x1xf32> to vector<64x128xf32>
    %4 = vector.broadcast %0 : vector<1x128xf32> to vector<64x128xf32>
    %5 = arith.mulf %3, %4 : vector<64x128xf32>
    %c0_4 = arith.constant 0 : index
    %c1_5 = arith.constant 1 : index
    %6 = vector.load %arg2[%c0_4, %c1_5] : memref<256x9xf32, #tpu.memory_space<vmem>>, vector<64x1xf32>
    %7 = vector.broadcast %6 : vector<64x1xf32> to vector<64x128xf32>
    %8 = vector.broadcast %1 : vector<1x128xf32> to vector<64x128xf32>
    %9 = arith.mulf %7, %8 : vector<64x128xf32>
    %10 = arith.addf %5, %9 : vector<64x128xf32>
    %c0_6 = arith.constant 0 : index
    %c2 = arith.constant 2 : index
    %11 = vector.load %arg2[%c0_6, %c2] : memref<256x9xf32, #tpu.memory_space<vmem>>, vector<64x1xf32>
    %12 = vector.broadcast %11 : vector<64x1xf32> to vector<64x128xf32>
    %13 = arith.addf %10, %12 : vector<64x128xf32>
    %c2_7 = arith.constant 2 : index
    %c0_8 = arith.constant 0 : index
    %14 = vector.load %arg1[%c2_7, %c0_8] : memref<8x128xf32, #tpu.memory_space<vmem>>, vector<1x128xf32>
    %c3 = arith.constant 3 : index
    %c0_9 = arith.constant 0 : index
    %15 = vector.load %arg1[%c3, %c0_9] : memref<8x128xf32, #tpu.memory_space<vmem>>, vector<1x128xf32>
    %c64 = arith.constant 64 : index
    %c0_10 = arith.constant 0 : index
    %16 = vector.load %arg2[%c64, %c0_10] : memref<256x9xf32, #tpu.memory_space<vmem>>, vector<64x1xf32>
    %17 = vector.broadcast %16 : vector<64x1xf32> to vector<64x128xf32>
    %18 = vector.broadcast %14 : vector<1x128xf32> to vector<64x128xf32>
    %19 = arith.mulf %17, %18 : vector<64x128xf32>
    %c64_11 = arith.constant 64 : index
    %c1_12 = arith.constant 1 : index
    %20 = vector.load %arg2[%c64_11, %c1_12] : memref<256x9xf32, #tpu.memory_space<vmem>>, vector<64x1xf32>
    %21 = vector.broadcast %20 : vector<64x1xf32> to vector<64x128xf32>
    %22 = vector.broadcast %15 : vector<1x128xf32> to vector<64x128xf32>
    %23 = arith.mulf %21, %22 : vector<64x128xf32>
    %24 = arith.addf %19, %23 : vector<64x128xf32>
    %c64_13 = arith.constant 64 : index
    %c2_14 = arith.constant 2 : index
    %25 = vector.load %arg2[%c64_13, %c2_14] : memref<256x9xf32, #tpu.memory_space<vmem>>, vector<64x1xf32>
    %26 = vector.broadcast %25 : vector<64x1xf32> to vector<64x128xf32>
    %27 = arith.addf %24, %26 : vector<64x128xf32>
    %c4 = arith.constant 4 : index
    %c0_15 = arith.constant 0 : index
    %28 = vector.load %arg1[%c4, %c0_15] : memref<8x128xf32, #tpu.memory_space<vmem>>, vector<1x128xf32>
    %c5 = arith.constant 5 : index
    %c0_16 = arith.constant 0 : index
    %29 = vector.load %arg1[%c5, %c0_16] : memref<8x128xf32, #tpu.memory_space<vmem>>, vector<1x128xf32>
    %c128 = arith.constant 128 : index
    %c0_17 = arith.constant 0 : index
    %30 = vector.load %arg2[%c128, %c0_17] : memref<256x9xf32, #tpu.memory_space<vmem>>, vector<64x1xf32>
    %31 = vector.broadcast %30 : vector<64x1xf32> to vector<64x128xf32>
    %32 = vector.broadcast %28 : vector<1x128xf32> to vector<64x128xf32>
    %33 = arith.mulf %31, %32 : vector<64x128xf32>
    %c128_18 = arith.constant 128 : index
    %c1_19 = arith.constant 1 : index
    %34 = vector.load %arg2[%c128_18, %c1_19] : memref<256x9xf32, #tpu.memory_space<vmem>>, vector<64x1xf32>
    %35 = vector.broadcast %34 : vector<64x1xf32> to vector<64x128xf32>
    %36 = vector.broadcast %29 : vector<1x128xf32> to vector<64x128xf32>
    %37 = arith.mulf %35, %36 : vector<64x128xf32>
    %38 = arith.addf %33, %37 : vector<64x128xf32>
    %c128_20 = arith.constant 128 : index
    %c2_21 = arith.constant 2 : index
    %39 = vector.load %arg2[%c128_20, %c2_21] : memref<256x9xf32, #tpu.memory_space<vmem>>, vector<64x1xf32>
    %40 = vector.broadcast %39 : vector<64x1xf32> to vector<64x128xf32>
    %41 = arith.addf %38, %40 : vector<64x128xf32>
    %c6 = arith.constant 6 : index
    %c0_22 = arith.constant 0 : index
    %42 = vector.load %arg1[%c6, %c0_22] : memref<8x128xf32, #tpu.memory_space<vmem>>, vector<1x128xf32>
    %c7 = arith.constant 7 : index
    %c0_23 = arith.constant 0 : index
    %43 = vector.load %arg1[%c7, %c0_23] : memref<8x128xf32, #tpu.memory_space<vmem>>, vector<1x128xf32>
    %c192 = arith.constant 192 : index
    %c0_24 = arith.constant 0 : index
    %44 = vector.load %arg2[%c192, %c0_24] : memref<256x9xf32, #tpu.memory_space<vmem>>, vector<64x1xf32>
    %45 = vector.broadcast %44 : vector<64x1xf32> to vector<64x128xf32>
    %46 = vector.broadcast %42 : vector<1x128xf32> to vector<64x128xf32>
    %47 = arith.mulf %45, %46 : vector<64x128xf32>
    %c192_25 = arith.constant 192 : index
    %c1_26 = arith.constant 1 : index
    %48 = vector.load %arg2[%c192_25, %c1_26] : memref<256x9xf32, #tpu.memory_space<vmem>>, vector<64x1xf32>
    %49 = vector.broadcast %48 : vector<64x1xf32> to vector<64x128xf32>
    %50 = vector.broadcast %43 : vector<1x128xf32> to vector<64x128xf32>
    %51 = arith.mulf %49, %50 : vector<64x128xf32>
    %52 = arith.addf %47, %51 : vector<64x128xf32>
    %c192_27 = arith.constant 192 : index
    %c2_28 = arith.constant 2 : index
    %53 = vector.load %arg2[%c192_27, %c2_28] : memref<256x9xf32, #tpu.memory_space<vmem>>, vector<64x1xf32>
    %54 = vector.broadcast %53 : vector<64x1xf32> to vector<64x128xf32>
    %55 = arith.addf %52, %54 : vector<64x128xf32>
    %56 = tpu.concatenate %13, %27, %41, %55 in 0 : vector<64x128xf32>, vector<64x128xf32>, vector<64x128xf32>, vector<64x128xf32> -> vector<256x128xf32>
    %cst = arith.constant 0.000000e+00 : f32
    %57 = vector.broadcast %cst : f32 to vector<256x128xf32>
    %58 = arith.maximumf %56, %57 : vector<256x128xf32>
    %c0_29 = arith.constant 0 : index
    %c0_30 = arith.constant 0 : index
    %c0_31 = arith.constant 0 : index
    %59 = vector.load %arg3[%c0_29, %c0_30, %c0_31] : memref<4x256x256xbf16, #tpu.memory_space<vmem>>, vector<1x256x256xbf16>
    %60 = vector.shape_cast %59 : vector<1x256x256xbf16> to vector<256x256xbf16>
    %61 = arith.truncf %58 : vector<256x128xf32> to vector<256x128xbf16>
    %cst_32 = arith.constant dense<0.000000e+00> : vector<256x128xf32>
    %62 = tpu.matmul %60, %61, %cst_32 {dimension_numbers = #tpu.dot_dimension_numbers<[1], [0], [0], [1], [0, 0, 1, 1], [], []>} : vector<256x256xbf16>, vector<256x128xbf16>, vector<256x128xf32> -> vector<256x128xf32>
    %c0_33 = arith.constant 0 : index
    %c3_34 = arith.constant 3 : index
    %63 = vector.load %arg2[%c0_33, %c3_34] : memref<256x9xf32, #tpu.memory_space<vmem>>, vector<256x1xf32>
    %64 = vector.broadcast %63 : vector<256x1xf32> to vector<256x128xf32>
    %65 = arith.addf %62, %64 : vector<256x128xf32>
    %cst_35 = arith.constant 0.000000e+00 : f32
    %66 = vector.broadcast %cst_35 : f32 to vector<256x128xf32>
    %67 = arith.maximumf %65, %66 : vector<256x128xf32>
    %c1_36 = arith.constant 1 : index
    %c0_37 = arith.constant 0 : index
    %c0_38 = arith.constant 0 : index
    %68 = vector.load %arg3[%c1_36, %c0_37, %c0_38] : memref<4x256x256xbf16, #tpu.memory_space<vmem>>, vector<1x256x256xbf16>
    %69 = vector.shape_cast %68 : vector<1x256x256xbf16> to vector<256x256xbf16>
    %70 = arith.truncf %67 : vector<256x128xf32> to vector<256x128xbf16>
    %cst_39 = arith.constant dense<0.000000e+00> : vector<256x128xf32>
    %71 = tpu.matmul %69, %70, %cst_39 {dimension_numbers = #tpu.dot_dimension_numbers<[1], [0], [0], [1], [0, 0, 1, 1], [], []>} : vector<256x256xbf16>, vector<256x128xbf16>, vector<256x128xf32> -> vector<256x128xf32>
    %c0_40 = arith.constant 0 : index
    %c4_41 = arith.constant 4 : index
    %72 = vector.load %arg2[%c0_40, %c4_41] : memref<256x9xf32, #tpu.memory_space<vmem>>, vector<256x1xf32>
    %73 = vector.broadcast %72 : vector<256x1xf32> to vector<256x128xf32>
    %74 = arith.addf %71, %73 : vector<256x128xf32>
    %cst_42 = arith.constant 0.000000e+00 : f32
    %75 = vector.broadcast %cst_42 : f32 to vector<256x128xf32>
    %76 = arith.maximumf %74, %75 : vector<256x128xf32>
    %c2_43 = arith.constant 2 : index
    %c0_44 = arith.constant 0 : index
    %c0_45 = arith.constant 0 : index
    %77 = vector.load %arg3[%c2_43, %c0_44, %c0_45] : memref<4x256x256xbf16, #tpu.memory_space<vmem>>, vector<1x256x256xbf16>
    %78 = vector.shape_cast %77 : vector<1x256x256xbf16> to vector<256x256xbf16>
    %79 = arith.truncf %76 : vector<256x128xf32> to vector<256x128xbf16>
    %cst_46 = arith.constant dense<0.000000e+00> : vector<256x128xf32>
    %80 = tpu.matmul %78, %79, %cst_46 {dimension_numbers = #tpu.dot_dimension_numbers<[1], [0], [0], [1], [0, 0, 1, 1], [], []>} : vector<256x256xbf16>, vector<256x128xbf16>, vector<256x128xf32> -> vector<256x128xf32>
    %c0_47 = arith.constant 0 : index
    %c5_48 = arith.constant 5 : index
    %81 = vector.load %arg2[%c0_47, %c5_48] : memref<256x9xf32, #tpu.memory_space<vmem>>, vector<256x1xf32>
    %82 = vector.broadcast %81 : vector<256x1xf32> to vector<256x128xf32>
    %83 = arith.addf %80, %82 : vector<256x128xf32>
    %cst_49 = arith.constant 0.000000e+00 : f32
    %84 = vector.broadcast %cst_49 : f32 to vector<256x128xf32>
    %85 = arith.maximumf %83, %84 : vector<256x128xf32>
    %c3_50 = arith.constant 3 : index
    %c0_51 = arith.constant 0 : index
    %c0_52 = arith.constant 0 : index
    %86 = vector.load %arg3[%c3_50, %c0_51, %c0_52] : memref<4x256x256xbf16, #tpu.memory_space<vmem>>, vector<1x256x256xbf16>
    %87 = vector.shape_cast %86 : vector<1x256x256xbf16> to vector<256x256xbf16>
    %88 = arith.truncf %85 : vector<256x128xf32> to vector<256x128xbf16>
    %cst_53 = arith.constant dense<0.000000e+00> : vector<256x128xf32>
    %89 = tpu.matmul %87, %88, %cst_53 {dimension_numbers = #tpu.dot_dimension_numbers<[1], [0], [0], [1], [0, 0, 1, 1], [], []>} : vector<256x256xbf16>, vector<256x128xbf16>, vector<256x128xf32> -> vector<256x128xf32>
    %c0_54 = arith.constant 0 : index
    %c6_55 = arith.constant 6 : index
    %90 = vector.load %arg2[%c0_54, %c6_55] : memref<256x9xf32, #tpu.memory_space<vmem>>, vector<256x1xf32>
    %91 = vector.broadcast %90 : vector<256x1xf32> to vector<256x128xf32>
    %92 = arith.addf %89, %91 : vector<256x128xf32>
    %cst_56 = arith.constant 0.000000e+00 : f32
    %93 = vector.broadcast %cst_56 : f32 to vector<256x128xf32>
    %94 = arith.maximumf %92, %93 : vector<256x128xf32>
    %c0_57 = arith.constant 0 : index
    %c7_58 = arith.constant 7 : index
    %95 = vector.load %arg2[%c0_57, %c7_58] : memref<256x9xf32, #tpu.memory_space<vmem>>, vector<256x1xf32>
    %96 = vector.broadcast %95 : vector<256x1xf32> to vector<256x128xf32>
    %97 = arith.mulf %94, %96 : vector<256x128xf32>
    %98 = vector.shape_cast %97 : vector<256x128xf32> to vector<4x64x128xf32>
    %cst_59 = arith.constant dense<0.000000e+00> : vector<4x128xf32>
    %99 = vector.multi_reduction <add>, %98, %cst_59 [1] : vector<4x64x128xf32> to vector<4x128xf32>
    %c0_60 = arith.constant 0 : index
    %c8 = arith.constant 8 : index
    %100 = vector.load %arg2[%c0_60, %c8] : memref<256x9xf32, #tpu.memory_space<vmem>>, vector<4x1xf32>
    %101 = vector.broadcast %100 : vector<4x1xf32> to vector<4x128xf32>
    %102 = arith.addf %99, %101 : vector<4x128xf32>
    %c0_61 = arith.constant 0 : index
    %c0_62 = arith.constant 0 : index
    %103 = vector.load %arg4[%c0_61, %c0_62] : memref<4x128xf32, #tpu.memory_space<vmem>>, vector<4x128xf32>
    tpu.vector_store %arg4[%c0_61, %c0_62], %102 {strides = array<i32>} : memref<4x128xf32, #tpu.memory_space<vmem>>, vector<4x128xf32>,
    return
  }
  func.func @transform_0(%arg0: i32) -> (i32, i32) {
    %c0_i32 = arith.constant 0 : i32
    %c0_i32_0 = arith.constant 0 : i32
    return %c0_i32, %arg0 : i32, i32
  }
  func.func @transform_1(%arg0: i32) -> (i32, i32) {
    %c0_i32 = arith.constant 0 : i32
    %c0_i32_0 = arith.constant 0 : i32
    %c0_i32_1 = arith.constant 0 : i32
    return %c0_i32, %c0_i32_0 : i32, i32
  }
  func.func @transform_2(%arg0: i32) -> (i32, i32, i32) {
    %c0_i32 = arith.constant 0 : i32
    %c0_i32_0 = arith.constant 0 : i32
    %c0_i32_1 = arith.constant 0 : i32
    %c0_i32_2 = arith.constant 0 : i32
    return %c0_i32, %c0_i32_0, %c0_i32_1 : i32, i32, i32
  }
  func.func @transform_3(%arg0: i32) -> (i32, i32) {
    %c0_i32 = arith.constant 0 : i32
    %c0_i32_0 = arith.constant 0 : i32
    return %c0_i32, %arg0 : i32, i32
  }
}

</mosaic_0001>

<llo_original>
// kernel: tpu_custom_call.1
$region0: #{tpu_custom_call.1}
  #allocation0 [shape = 'u32[]', space=smem, size = 0x4, offset = 0x4, fixed_abs, tag = 'smem constant byte address 0x4 - core index']
  #allocation1 [shape = 'u32[72,128]{1,0:T(1,128)}', space=vmem, size = 0x9000, scoped, tag = 'internal scratch']
  %s0 = inlined_call_operand.vmem [shape: f32[8,256], index: 0, kind: input, shape index: {}]
  %s1 = inlined_call_operand.vmem [shape: f32[256,9], index: 1, kind: input, shape index: {}]
  %s2 = inlined_call_operand.hbm [shape: bf16[4,256,256], index: 2, kind: input, shape index: {}]
  %s3 = inlined_call_operand.hbm [shape: f32[4,256], index: 3, kind: output, shape index: {}]
  %s4 = sld [smem:[#allocation0]]
  $region49: #{tpu_custom_call.1} parent=0
    _
  %s6 = ssub.s32 1, %s4
  %s7 = scalar_select 0, %s6, %s4
  $region1: #{tpu_custom_call.1} parent=0
    #allocation2 [shape = 'u8[524288]{0}', space=vmem, size = 0x80000, scoped, tag = 'input window, operand 2, single buffered']
    #allocation3 [shape = 's32[2]{0}', space=sflag, size = 0x8, scoped, tag = 'scoped memory for tpu_custom_call.1']
    #allocation4 [shape = 's32[2]{0}', space=sflag, size = 0x8, scoped, tag = 'scoped memory for tpu_custom_call.1']
    #allocation5 [shape = 'u8[4096]{0}', space=vmem, size = 0x1000, scoped, tag = 'output window, operand 0']
    %8 = vsyncpa [#allocation3], 0
    %9 = vsyncpa [#allocation4], 0
    %s10 = scalar_lea.sflag [#allocation4], 1
    %11 = vsyncpa %s10, 0
    loop: start=0, step=1, limit=4
    $region2: #{tpu_custom_call.1} parent=1 // loop_pre_header
      _
    $region3: #{tpu_custom_call.1} parent=1 // loop_header
      %s13 = sphi 0, %s17
      %p14 = scmp.ge.s32.totalorder %s13, 4
      %s23 = sphi 0, %s25
      %s26 = sphi 0, %s23
      %s27 = sphi 0, %s26
      %s43 = sphi 0, %s27
      %s47 = sphi 0, %s47
      %s49 = sphi 0, %s47
      %s50 = sphi 0, %s49
      %s64 = sphi 0, %s50
      %s68 = sphi 0, %s68
      %s70 = sphi 0, %s68
      %s71 = sphi 0, %s70
      %s85 = sphi 0, %s71
      %s91 = sphi 0, %s93
      %s94 = sphi 0, %s91
      %s95 = sphi 0, %s94
      %s111 = sphi 0, %s95
    $region4: #{tpu_custom_call.1} parent=1 // loop_header_branch
      %16 = sbr.rel (%p14) target = $region8
    $region5: #{tpu_custom_call.1} parent=1 // loop_body
      %s18 = ssub.s32 %s13, 1
      %s19 = ssub.s32 %s13, 2
      %s20 = sadd.s32 %s13, 1
      %s21 = ssub.s32 %s13, %s20
      %p22 = scmp.eq.s32.totalorder %s21, 0
      %s24 = sadd.s32 %s23, 1
      %s25 = scalar_select %p22, %s23, %s24
      %p28 = pneg %p22
      %p29 = scmp.eq.s32.totalorder %s13, 1
      %p30 = por %p28, %p29
      %p31 = scmp.ne.s32.totalorder %s23, %s26
      %p32 = scmp.eq.s32.totalorder %s13, 0
      %p33 = por %p31, %p32
      %p34 = scmp.ne.s32.totalorder %s23, %s26
      %p35 = scmp.eq.s32.totalorder %s18, 1
      %p36 = por %p34, %p35
      %p37 = scmp.ne.s32.totalorder %s26, %s27
      %p38 = scmp.eq.s32.totalorder %s18, 0
      %p39 = por %p37, %p38
      %p40 = scmp.ne.s32.totalorder %s26, %s27
      %p41 = scmp.eq.s32.totalorder %s19, 1
      %p42 = por %p40, %p41
      %p44 = scmp.ne.s32.totalorder %s27, %s43
      %p45 = scmp.eq.s32.totalorder %s19, 0
      %p46 = por %p44, %p45
      %s48 = sadd.s32 %s47, 1
      %p51 = scmp.eq.s32.totalorder %s13, 1
      %p52 = scmp.ne.s32.totalorder %s47, %s49
      %p53 = scmp.eq.s32.totalorder %s13, 0
      %p54 = por %p52, %p53
      %p55 = scmp.ne.s32.totalorder %s47, %s49
      %p56 = scmp.eq.s32.totalorder %s18, 1
      %p57 = por %p55, %p56
      %p58 = scmp.ne.s32.totalorder %s49, %s50
      %p59 = scmp.eq.s32.totalorder %s18, 0
      %p60 = por %p58, %p59
      %p61 = scmp.ne.s32.totalorder %s49, %s50
      %p62 = scmp.eq.s32.totalorder %s19, 1
      %p63 = por %p61, %p62
      %p65 = scmp.ne.s32.totalorder %s50, %s64
      %p66 = scmp.eq.s32.totalorder %s19, 0
      %p67 = por %p65, %p66
      %s69 = sadd.s32 %s68, 1
      %p72 = scmp.eq.s32.totalorder %s13, 1
      %p73 = scmp.ne.s32.totalorder %s68, %s70
      %p74 = scmp.eq.s32.totalorder %s13, 0
      %p75 = por %p73, %p74
      %p76 = scmp.ne.s32.totalorder %s68, %s70
      %p77 = scmp.eq.s32.totalorder %s18, 1
      %p78 = por %p76, %p77
      %p79 = scmp.ne.s32.totalorder %s70, %s71
      %p80 = scmp.eq.s32.totalorder %s18, 0
      %p81 = por %p79, %p80
      %p82 = scmp.ne.s32.totalorder %s70, %s71
      %p83 = scmp.eq.s32.totalorder %s19, 1
      %p84 = por %p82, %p83
      %p86 = scmp.ne.s32.totalorder %s71, %s85
      %p87 = scmp.eq.s32.totalorder %s19, 0
      %p88 = por %p86, %p87
      %s89 = ssub.s32 %s13, %s20
      %p90 = scmp.eq.s32.totalorder %s89, 0
      %s92 = sadd.s32 %s91, 1
      %s93 = scalar_select %p90, %s91, %s92
      %p96 = pneg %p90
      %p97 = scmp.eq.s32.totalorder %s13, 1
      %p98 = por %p96, %p97
      %p99 = scmp.ne.s32.totalorder %s91, %s94
      %p100 = scmp.eq.s32.totalorder %s13, 0
      %p101 = por %p99, %p100
      %p102 = scmp.ne.s32.totalorder %s91, %s94
      %p103 = scmp.eq.s32.totalorder %s18, 1
      %p104 = por %p102, %p103
      %p105 = scmp.ne.s32.totalorder %s94, %s95
      %p106 = scmp.eq.s32.totalorder %s18, 0
      %p107 = por %p105, %p106
      %p108 = scmp.ne.s32.totalorder %s94, %s95
      %p109 = scmp.eq.s32.totalorder %s19, 1
      %p110 = por %p108, %p109
      %p112 = scmp.ne.s32.totalorder %s95, %s111
      %p113 = scmp.eq.s32.totalorder %s19, 0
      %p114 = por %p112, %p113
      %p115 = scmp.le.s32.totalorder 1, %s13
      %p116 = scmp.lt.s32.totalorder %s13, 3
      %p117 = pnand %p115, %p116
      %p118 = pneg %p117
      // Predicated region
      $region9: #{tpu_custom_call.1} parent=5 // pred_check
        _
      $region10: #{tpu_custom_call.1} parent=5 // pred_check_branch
        %120 = sbr.rel (%p117) target = $region12
      $region11: #{tpu_custom_call.1} parent=5 // pred_region
        %s121 = ssub.s32 %s13, 1
        // Predicated region
        $region13: #{tpu_custom_call.1} parent=11 // pred_check
          %p122 = pneg %p60
        $region14: #{tpu_custom_call.1} parent=11 // pred_check_branch
          %124 = sbr.rel (%p122) target = $region16
        $region15: #{tpu_custom_call.1} parent=11 // pred_region
          _
        $region16: #{tpu_custom_call.1} parent=11 // pred_fallthru
          _
        // Predicated region
        $region17: #{tpu_custom_call.1} parent=11 // pred_check
          %p125 = pneg %p81
        $region18: #{tpu_custom_call.1} parent=11 // pred_check_branch
          %127 = sbr.rel (%p125) target = $region20
        $region19: #{tpu_custom_call.1} parent=11 // pred_region
          %129 = vsyncadd [#allocation3], 0
          %s130 = sshll.u32 %s2, 4
          %s131 = int_to_ptr.hbm [resolvable:$true] %s130
          %s132 = sshll.u32 [#allocation2], 4
          %s133 = int_to_ptr.vmem [resolvable:$true] %s132
          %138 = dma.hbm_to_vmem [thread:$0]  %s131, 16384, %s133, [#allocation3], 128, 128, 8
        $region20: #{tpu_custom_call.1} parent=11 // pred_fallthru
          _
      $region12: #{tpu_custom_call.1} parent=5 // pred_fallthru
        _
      %p139 = scmp.lt.s32.totalorder %s13, 2
      // Predicated region
      $region21: #{tpu_custom_call.1} parent=5 // pred_check
        %p140 = pneg %p139
      $region22: #{tpu_custom_call.1} parent=5 // pred_check_branch
        %142 = sbr.rel (%p140) target = $region24
      $region23: #{tpu_custom_call.1} parent=5 // pred_region
        // Predicated region
        $region25: #{tpu_custom_call.1} parent=23 // pred_check
          %p143 = pneg %p33
        $region26: #{tpu_custom_call.1} parent=23 // pred_check_branch
          %145 = sbr.rel (%p143) target = $region28
        $region27: #{tpu_custom_call.1} parent=23 // pred_region
          %p146 = scmp.lt.s32.totalorder %s13, 1
          %s147 = scalar_select %p146, %s13, 1
          %s148 = smul.addr %s147, 8
          %s149 = scalar_lea.vmem %s0, %s148
        $region28: #{tpu_custom_call.1} parent=23 // pred_fallthru
          _
      $region24: #{tpu_custom_call.1} parent=5 // pred_fallthru
        _
      %p150 = scmp.le.s32.totalorder 1, %s13
      %p151 = scmp.lt.s32.totalorder %s13, 3
      %p152 = pnand %p150, %p151
      %p153 = pneg %p152
      // Predicated region
      $region29: #{tpu_custom_call.1} parent=5 // pred_check
        _
      $region30: #{tpu_custom_call.1} parent=5 // pred_check_branch
        %155 = sbr.rel (%p152) target = $region32
      $region31: #{tpu_custom_call.1} parent=5 // pred_region
        %s156 = ssub.s32 %s13, 1
        // Predicated region
        $region33: #{tpu_custom_call.1} parent=31 // pred_check
          %p157 = pneg %p81
        $region34: #{tpu_custom_call.1} parent=31 // pred_check_branch
          %159 = sbr.rel (%p157) target = $region36
        $region35: #{tpu_custom_call.1} parent=31 // pred_region
          %161 = dma.done [#allocation3], 16384
        $region36: #{tpu_custom_call.1} parent=31 // pred_fallthru
          _
        %p162 = scmp.lt.s32.totalorder %s18, 1
        %s163 = scalar_select %p162, %s18, 1
        %s164 = smul.addr %s163, 8
        %s165 = scalar_lea.vmem %s0, %s164
        %p166 = pneg %p39
        %p167 = pneg %p36
        %p168 = pneg %p60
        %p169 = pneg %p57
        %p170 = pneg %p81
        %p171 = pneg %p78
        %p172 = pneg %p107
        %p173 = pneg %p104
        %s174 = sand.u32 %s94, 1
        %s175 = scalar_lea.sflag [#allocation4], %s174
        %s176 = sand.u32 %s94, 1
        %s177 = smul.addr %s176, 4
        %s178 = scalar_lea.vmem [#allocation5], %s177
        %p179 = scmp.lt.s32.totalorder %s18, 1
        %s180 = scalar_select %p179, %s18, 1
        %s181 = smul.addr %s180, 8
        %s182 = scalar_lea.vmem %s0, %s181
        %v183 = vld [vmem:[%s182] sm:$0x1]
        %v184 = vld [vmem:[%s182 + $0x1] sm:$0x1]
        %v185 = vld [vmem:[%s1] sm:$0xff]
        %v186 = vld [vmem:[%s1 + $0x8] sm:$0xff]
        %v187 = vld [vmem:[%s1 + $0x10] sm:$0xff]
        %v188 = vld [vmem:[%s1 + $0x18] sm:$0xff]
        %v189 = vld [vmem:[%s1 + $0x20] sm:$0xff]
        %v190 = vld [vmem:[%s1 + $0x28] sm:$0xff]
        %v191 = vld [vmem:[%s1 + $0x30] sm:$0xff]
        %v192 = vld [vmem:[%s1 + $0x38] sm:$0xff]
        %194 = vset.pattern.permute.xlu0 0
        %195 = vperm.xlu0 %194, %v185
        %v196 = vpop.permute.xlu0 %195
        %199 = vset.pattern.permute.xlu0 0
        %200 = vperm.xlu0 %199, %v186
        %v201 = vpop.permute.xlu0 %200
        %204 = vset.pattern.permute.xlu0 0
        %205 = vperm.xlu0 %204, %v187
        %v206 = vpop.permute.xlu0 %205
        %209 = vset.pattern.permute.xlu0 0
        %210 = vperm.xlu0 %209, %v188
        %v211 = vpop.permute.xlu0 %210
        %214 = vset.pattern.permute.xlu0 0
        %215 = vperm.xlu0 %214, %v189
        %v216 = vpop.permute.xlu0 %215
        %219 = vset.pattern.permute.xlu0 0
        %220 = vperm.xlu0 %219, %v190
        %v221 = vpop.permute.xlu0 %220
        %224 = vset.pattern.permute.xlu0 0
        %225 = vperm.xlu0 %224, %v191
        %v226 = vpop.permute.xlu0 %225
        %229 = vset.pattern.permute.xlu0 0
        %230 = vperm.xlu0 %229, %v192
        %v231 = vpop.permute.xlu0 %230
        %v233 = vperm.slane %v183, 0
        %v234 = vmul.f32 %v196, %v233
        %v235 = vmul.f32 %v201, %v233
        %v236 = vmul.f32 %v206, %v233
        %v237 = vmul.f32 %v211, %v233
        %v238 = vmul.f32 %v216, %v233
        %v239 = vmul.f32 %v221, %v233
        %v240 = vmul.f32 %v226, %v233
        %v241 = vmul.f32 %v231, %v233
        %242 = vset.pattern.permute.xlu0 1
        %243 = vperm.xlu0 %242, %v185
        %v244 = vpop.permute.xlu0 %243
        %246 = vset.pattern.permute.xlu0 1
        %247 = vperm.xlu0 %246, %v186
        %v248 = vpop.permute.xlu0 %247
        %250 = vset.pattern.permute.xlu0 1
        %251 = vperm.xlu0 %250, %v187
        %v252 = vpop.permute.xlu0 %251
        %254 = vset.pattern.permute.xlu0 1
        %255 = vperm.xlu0 %254, %v188
        %v256 = vpop.permute.xlu0 %255
        %258 = vset.pattern.permute.xlu0 1
        %259 = vperm.xlu0 %258, %v189
        %v260 = vpop.permute.xlu0 %259
        %262 = vset.pattern.permute.xlu0 1
        %263 = vperm.xlu0 %262, %v190
        %v264 = vpop.permute.xlu0 %263
        %266 = vset.pattern.permute.xlu0 1
        %267 = vperm.xlu0 %266, %v191
        %v268 = vpop.permute.xlu0 %267
        %270 = vset.pattern.permute.xlu0 1
        %271 = vperm.xlu0 %270, %v192
        %v272 = vpop.permute.xlu0 %271
        %v274 = vperm.slane %v184, 0
        %v275 = vmul.f32 %v244, %v274
        %v276 = vmul.f32 %v248, %v274
        %v277 = vmul.f32 %v252, %v274
        %v278 = vmul.f32 %v256, %v274
        %v279 = vmul.f32 %v260, %v274
        %v280 = vmul.f32 %v264, %v274
        %v281 = vmul.f32 %v268, %v274
        %v282 = vmul.f32 %v272, %v274
        %v283 = vadd.f32 %v234, %v275
        %v284 = vadd.f32 %v235, %v276
        %v285 = vadd.f32 %v236, %v277
        %v286 = vadd.f32 %v237, %v278
        %v287 = vadd.f32 %v238, %v279
        %v288 = vadd.f32 %v239, %v280
        %v289 = vadd.f32 %v240, %v281
        %v290 = vadd.f32 %v241, %v282
        %291 = vset.pattern.permute.xlu0 2
        %292 = vperm.xlu0 %291, %v185
        %v293 = vpop.permute.xlu0 %292
        %295 = vset.pattern.permute.xlu0 2
        %296 = vperm.xlu0 %295, %v186
        %v297 = vpop.permute.xlu0 %296
        %299 = vset.pattern.permute.xlu0 2
        %300 = vperm.xlu0 %299, %v187
        %v301 = vpop.permute.xlu0 %300
        %303 = vset.pattern.permute.xlu0 2
        %304 = vperm.xlu0 %303, %v188
        %v305 = vpop.permute.xlu0 %304
        %307 = vset.pattern.permute.xlu0 2
        %308 = vperm.xlu0 %307, %v189
        %v309 = vpop.permute.xlu0 %308
        %311 = vset.pattern.permute.xlu0 2
        %312 = vperm.xlu0 %311, %v190
        %v313 = vpop.permute.xlu0 %312
        %315 = vset.pattern.permute.xlu0 2
        %316 = vperm.xlu0 %315, %v191
        %v317 = vpop.permute.xlu0 %316
        %319 = vset.pattern.permute.xlu0 2
        %320 = vperm.xlu0 %319, %v192
        %v321 = vpop.permute.xlu0 %320
        %v323 = vadd.f32 %v283, %v293
        %v324 = vadd.f32 %v284, %v297
        %v325 = vadd.f32 %v285, %v301
        %v326 = vadd.f32 %v286, %v305
        %v327 = vadd.f32 %v287, %v309
        %v328 = vadd.f32 %v288, %v313
        %v329 = vadd.f32 %v289, %v317
        %v330 = vadd.f32 %v290, %v321
        %v331 = vld [vmem:[%s182 + $0x2] sm:$0x1]
        %v332 = vld [vmem:[%s182 + $0x3] sm:$0x1]
        %v333 = vld [vmem:[%s1 + $0x40] sm:$0xff]
        %v334 = vld [vmem:[%s1 + $0x48] sm:$0xff]
        %v335 = vld [vmem:[%s1 + $0x50] sm:$0xff]
        %v336 = vld [vmem:[%s1 + $0x58] sm:$0xff]
        %v337 = vld [vmem:[%s1 + $0x60] sm:$0xff]
        %v338 = vld [vmem:[%s1 + $0x68] sm:$0xff]
        %v339 = vld [vmem:[%s1 + $0x70] sm:$0xff]
        %v340 = vld [vmem:[%s1 + $0x78] sm:$0xff]
        %342 = vset.pattern.permute.xlu0 0
        %343 = vperm.xlu0 %342, %v333
        %v344 = vpop.permute.xlu0 %343
        %347 = vset.pattern.permute.xlu0 0
        %348 = vperm.xlu0 %347, %v334
        %v349 = vpop.permute.xlu0 %348
        %352 = vset.pattern.permute.xlu0 0
        %353 = vperm.xlu0 %352, %v335
        %v354 = vpop.permute.xlu0 %353
        %357 = vset.pattern.permute.xlu0 0
        %358 = vperm.xlu0 %357, %v336
        %v359 = vpop.permute.xlu0 %358
        %362 = vset.pattern.permute.xlu0 0
        %363 = vperm.xlu0 %362, %v337
        %v364 = vpop.permute.xlu0 %363
        %367 = vset.pattern.permute.xlu0 0
        %368 = vperm.xlu0 %367, %v338
        %v369 = vpop.permute.xlu0 %368
        %372 = vset.pattern.permute.xlu0 0
        %373 = vperm.xlu0 %372, %v339
        %v374 = vpop.permute.xlu0 %373
        %377 = vset.pattern.permute.xlu0 0
        %378 = vperm.xlu0 %377, %v340
        %v379 = vpop.permute.xlu0 %378
        %v381 = vperm.slane %v331, 0
        %v382 = vmul.f32 %v344, %v381
        %v383 = vmul.f32 %v349, %v381
        %v384 = vmul.f32 %v354, %v381
        %v385 = vmul.f32 %v359, %v381
        %v386 = vmul.f32 %v364, %v381
        %v387 = vmul.f32 %v369, %v381
        %v388 = vmul.f32 %v374, %v381
        %v389 = vmul.f32 %v379, %v381
        %390 = vset.pattern.permute.xlu0 1
        %391 = vperm.xlu0 %390, %v333
        %v392 = vpop.permute.xlu0 %391
        %394 = vset.pattern.permute.xlu0 1
        %395 = vperm.xlu0 %394, %v334
        %v396 = vpop.permute.xlu0 %395
        %398 = vset.pattern.permute.xlu0 1
        %399 = vperm.xlu0 %398, %v335
        %v400 = vpop.permute.xlu0 %399
        %402 = vset.pattern.permute.xlu0 1
        %403 = vperm.xlu0 %402, %v336
        %v404 = vpop.permute.xlu0 %403
        %406 = vset.pattern.permute.xlu0 1
        %407 = vperm.xlu0 %406, %v337
        %v408 = vpop.permute.xlu0 %407
        %410 = vset.pattern.permute.xlu0 1
        %411 = vperm.xlu0 %410, %v338
        %v412 = vpop.permute.xlu0 %411
        %414 = vset.pattern.permute.xlu0 1
        %415 = vperm.xlu0 %414, %v339
        %v416 = vpop.permute.xlu0 %415
        %418 = vset.pattern.permute.xlu0 1
        %419 = vperm.xlu0 %418, %v340
        %v420 = vpop.permute.xlu0 %419
        %v422 = vperm.slane %v332, 0
        %v423 = vmul.f32 %v392, %v422
        %v424 = vmul.f32 %v396, %v422
        %v425 = vmul.f32 %v400, %v422
        %v426 = vmul.f32 %v404, %v422
        %v427 = vmul.f32 %v408, %v422
        %v428 = vmul.f32 %v412, %v422
        %v429 = vmul.f32 %v416, %v422
        %v430 = vmul.f32 %v420, %v422
        %v431 = vadd.f32 %v382, %v423
        %v432 = vadd.f32 %v383, %v424
        %v433 = vadd.f32 %v384, %v425
        %v434 = vadd.f32 %v385, %v426
        %v435 = vadd.f32 %v386, %v427
        %v436 = vadd.f32 %v387, %v428
        %v437 = vadd.f32 %v388, %v429
        %v438 = vadd.f32 %v389, %v430
        %439 = vset.pattern.permute.xlu0 2
        %440 = vperm.xlu0 %439, %v333
        %v441 = vpop.permute.xlu0 %440
        %443 = vset.pattern.permute.xlu0 2
        %444 = vperm.xlu0 %443, %v334
        %v445 = vpop.permute.xlu0 %444
        %447 = vset.pattern.permute.xlu0 2
        %448 = vperm.xlu0 %447, %v335
        %v449 = vpop.permute.xlu0 %448
        %451 = vset.pattern.permute.xlu0 2
        %452 = vperm.xlu0 %451, %v336
        %v453 = vpop.permute.xlu0 %452
        %455 = vset.pattern.permute.xlu0 2
        %456 = vperm.xlu0 %455, %v337
        %v457 = vpop.permute.xlu0 %456
        %459 = vset.pattern.permute.xlu0 2
        %460 = vperm.xlu0 %459, %v338
        %v461 = vpop.permute.xlu0 %460
        %463 = vset.pattern.permute.xlu0 2
        %464 = vperm.xlu0 %463, %v339
        %v465 = vpop.permute.xlu0 %464
        %467 = vset.pattern.permute.xlu0 2
        %468 = vperm.xlu0 %467, %v340
        %v469 = vpop.permute.xlu0 %468
        %v471 = vadd.f32 %v431, %v441
        %v472 = vadd.f32 %v432, %v445
        %v473 = vadd.f32 %v433, %v449
        %v474 = vadd.f32 %v434, %v453
        %v475 = vadd.f32 %v435, %v457
        %v476 = vadd.f32 %v436, %v461
        %v477 = vadd.f32 %v437, %v465
        %v478 = vadd.f32 %v438, %v469
        %v479 = vld [vmem:[%s182 + $0x4] sm:$0x1]
        %v480 = vld [vmem:[%s182 + $0x5] sm:$0x1]
        %v481 = vld [vmem:[%s1 + $0x80] sm:$0xff]
        %v482 = vld [vmem:[%s1 + $0x88] sm:$0xff]
        %v483 = vld [vmem:[%s1 + $0x90] sm:$0xff]
        %v484 = vld [vmem:[%s1 + $0x98] sm:$0xff]
        %v485 = vld [vmem:[%s1 + $0xa0] sm:$0xff]
        %v486 = vld [vmem:[%s1 + $0xa8] sm:$0xff]
        %v487 = vld [vmem:[%s1 + $0xb0] sm:$0xff]
        %v488 = vld [vmem:[%s1 + $0xb8] sm:$0xff]
        %490 = vset.pattern.permute.xlu0 0
        %491 = vperm.xlu0 %490, %v481
        %v492 = vpop.permute.xlu0 %491
        %495 = vset.pattern.permute.xlu0 0
        %496 = vperm.xlu0 %495, %v482
        %v497 = vpop.permute.xlu0 %496
        %500 = vset.pattern.permute.xlu0 0
        %501 = vperm.xlu0 %500, %v483
        %v502 = vpop.permute.xlu0 %501
        %505 = vset.pattern.permute.xlu0 0
        %506 = vperm.xlu0 %505, %v484
        %v507 = vpop.permute.xlu0 %506
        %510 = vset.pattern.permute.xlu0 0
        %511 = vperm.xlu0 %510, %v485
        %v512 = vpop.permute.xlu0 %511
        %515 = vset.pattern.permute.xlu0 0
        %516 = vperm.xlu0 %515, %v486
        %v517 = vpop.permute.xlu0 %516
        %520 = vset.pattern.permute.xlu0 0
        %521 = vperm.xlu0 %520, %v487
        %v522 = vpop.permute.xlu0 %521
        %525 = vset.pattern.permute.xlu0 0
        %526 = vperm.xlu0 %525, %v488
        %v527 = vpop.permute.xlu0 %526
        %v529 = vperm.slane %v479, 0
        %v530 = vmul.f32 %v492, %v529
        %v531 = vmul.f32 %v497, %v529
        %v532 = vmul.f32 %v502, %v529
        %v533 = vmul.f32 %v507, %v529
        %v534 = vmul.f32 %v512, %v529
        %v535 = vmul.f32 %v517, %v529
        %v536 = vmul.f32 %v522, %v529
        %v537 = vmul.f32 %v527, %v529
        %538 = vset.pattern.permute.xlu0 1
        %539 = vperm.xlu0 %538, %v481
        %v540 = vpop.permute.xlu0 %539
        %542 = vset.pattern.permute.xlu0 1
        %543 = vperm.xlu0 %542, %v482
        %v544 = vpop.permute.xlu0 %543
        %546 = vset.pattern.permute.xlu0 1
        %547 = vperm.xlu0 %546, %v483
        %v548 = vpop.permute.xlu0 %547
        %550 = vset.pattern.permute.xlu0 1
        %551 = vperm.xlu0 %550, %v484
        %v552 = vpop.permute.xlu0 %551
        %554 = vset.pattern.permute.xlu0 1
        %555 = vperm.xlu0 %554, %v485
        %v556 = vpop.permute.xlu0 %555
        %558 = vset.pattern.permute.xlu0 1
        %559 = vperm.xlu0 %558, %v486
        %v560 = vpop.permute.xlu0 %559
        %562 = vset.pattern.permute.xlu0 1
        %563 = vperm.xlu0 %562, %v487
        %v564 = vpop.permute.xlu0 %563
        %566 = vset.pattern.permute.xlu0 1
        %567 = vperm.xlu0 %566, %v488
        %v568 = vpop.permute.xlu0 %567
        %v570 = vperm.slane %v480, 0
        %v571 = vmul.f32 %v540, %v570
        %v572 = vmul.f32 %v544, %v570
        %v573 = vmul.f32 %v548, %v570
        %v574 = vmul.f32 %v552, %v570
        %v575 = vmul.f32 %v556, %v570
        %v576 = vmul.f32 %v560, %v570
        %v577 = vmul.f32 %v564, %v570
        %v578 = vmul.f32 %v568, %v570
        %v579 = vadd.f32 %v530, %v571
        %v580 = vadd.f32 %v531, %v572
        %v581 = vadd.f32 %v532, %v573
        %v582 = vadd.f32 %v533, %v574
        %v583 = vadd.f32 %v534, %v575
        %v584 = vadd.f32 %v535, %v576
        %v585 = vadd.f32 %v536, %v577
        %v586 = vadd.f32 %v537, %v578
        %587 = vset.pattern.permute.xlu0 2
        %588 = vperm.xlu0 %587, %v481
        %v589 = vpop.permute.xlu0 %588
        %591 = vset.pattern.permute.xlu0 2
        %592 = vperm.xlu0 %591, %v482
        %v593 = vpop.permute.xlu0 %592
        %595 = vset.pattern.permute.xlu0 2
        %596 = vperm.xlu0 %595, %v483
        %v597 = vpop.permute.xlu0 %596
        %599 = vset.pattern.permute.xlu0 2
        %600 = vperm.xlu0 %599, %v484
        %v601 = vpop.permute.xlu0 %600
        %603 = vset.pattern.permute.xlu0 2
        %604 = vperm.xlu0 %603, %v485
        %v605 = vpop.permute.xlu0 %604
        %607 = vset.pattern.permute.xlu0 2
        %608 = vperm.xlu0 %607, %v486
        %v609 = vpop.permute.xlu0 %608
        %611 = vset.pattern.permute.xlu0 2
        %612 = vperm.xlu0 %611, %v487
        %v613 = vpop.permute.xlu0 %612
        %615 = vset.pattern.permute.xlu0 2
        %616 = vperm.xlu0 %615, %v488
        %v617 = vpop.permute.xlu0 %616
        %v619 = vadd.f32 %v579, %v589
        %v620 = vadd.f32 %v580, %v593
        %v621 = vadd.f32 %v581, %v597
        %v622 = vadd.f32 %v582, %v601
        %v623 = vadd.f32 %v583, %v605
        %v624 = vadd.f32 %v584, %v609
        %v625 = vadd.f32 %v585, %v613
        %v626 = vadd.f32 %v586, %v617
        %v627 = vld [vmem:[%s182 + $0x6] sm:$0x1]
        %v628 = vld [vmem:[%s182 + $0x7] sm:$0x1]
        %v629 = vld [vmem:[%s1 + $0xc0] sm:$0xff]
        %v630 = vld [vmem:[%s1 + $0xc8] sm:$0xff]
        %v631 = vld [vmem:[%s1 + $0xd0] sm:$0xff]
        %v632 = vld [vmem:[%s1 + $0xd8] sm:$0xff]
        %v633 = vld [vmem:[%s1 + $0xe0] sm:$0xff]
        %v634 = vld [vmem:[%s1 + $0xe8] sm:$0xff]
        %v635 = vld [vmem:[%s1 + $0xf0] sm:$0xff]
        %v636 = vld [vmem:[%s1 + $0xf8] sm:$0xff]
        %638 = vset.pattern.permute.xlu0 0
        %639 = vperm.xlu0 %638, %v629
        %v640 = vpop.permute.xlu0 %639
        %643 = vset.pattern.permute.xlu0 0
        %644 = vperm.xlu0 %643, %v630
        %v645 = vpop.permute.xlu0 %644
        %648 = vset.pattern.permute.xlu0 0
        %649 = vperm.xlu0 %648, %v631
        %v650 = vpop.permute.xlu0 %649
        %653 = vset.pattern.permute.xlu0 0
        %654 = vperm.xlu0 %653, %v632
        %v655 = vpop.permute.xlu0 %654
        %658 = vset.pattern.permute.xlu0 0
        %659 = vperm.xlu0 %658, %v633
        %v660 = vpop.permute.xlu0 %659
        %663 = vset.pattern.permute.xlu0 0
        %664 = vperm.xlu0 %663, %v634
        %v665 = vpop.permute.xlu0 %664
        %668 = vset.pattern.permute.xlu0 0
        %669 = vperm.xlu0 %668, %v635
        %v670 = vpop.permute.xlu0 %669
        %673 = vset.pattern.permute.xlu0 0
        %674 = vperm.xlu0 %673, %v636
        %v675 = vpop.permute.xlu0 %674
        %v677 = vperm.slane %v627, 0
        %v678 = vmul.f32 %v640, %v677
        %v679 = vmul.f32 %v645, %v677
        %v680 = vmul.f32 %v650, %v677
        %v681 = vmul.f32 %v655, %v677
        %v682 = vmul.f32 %v660, %v677
        %v683 = vmul.f32 %v665, %v677
        %v684 = vmul.f32 %v670, %v677
        %v685 = vmul.f32 %v675, %v677
        %686 = vset.pattern.permute.xlu0 1
        %687 = vperm.xlu0 %686, %v629
        %v688 = vpop.permute.xlu0 %687
        %690 = vset.pattern.permute.xlu0 1
        %691 = vperm.xlu0 %690, %v630
        %v692 = vpop.permute.xlu0 %691
        %694 = vset.pattern.permute.xlu0 1
        %695 = vperm.xlu0 %694, %v631
        %v696 = vpop.permute.xlu0 %695
        %698 = vset.pattern.permute.xlu0 1
        %699 = vperm.xlu0 %698, %v632
        %v700 = vpop.permute.xlu0 %699
        %702 = vset.pattern.permute.xlu0 1
        %703 = vperm.xlu0 %702, %v633
        %v704 = vpop.permute.xlu0 %703
        %706 = vset.pattern.permute.xlu0 1
        %707 = vperm.xlu0 %706, %v634
        %v708 = vpop.permute.xlu0 %707
        %710 = vset.pattern.permute.xlu0 1
        %711 = vperm.xlu0 %710, %v635
        %v712 = vpop.permute.xlu0 %711
        %714 = vset.pattern.permute.xlu0 1
        %715 = vperm.xlu0 %714, %v636
        %v716 = vpop.permute.xlu0 %715
        %v718 = vperm.slane %v628, 0
        %v719 = vmul.f32 %v688, %v718
        %v720 = vmul.f32 %v692, %v718
        %v721 = vmul.f32 %v696, %v718
        %v722 = vmul.f32 %v700, %v718
        %v723 = vmul.f32 %v704, %v718
        %v724 = vmul.f32 %v708, %v718
        %v725 = vmul.f32 %v712, %v718
        %v726 = vmul.f32 %v716, %v718
        %v727 = vadd.f32 %v678, %v719
        %v728 = vadd.f32 %v679, %v720
        %v729 = vadd.f32 %v680, %v721
        %v730 = vadd.f32 %v681, %v722
        %v731 = vadd.f32 %v682, %v723
        %v732 = vadd.f32 %v683, %v724
        %v733 = vadd.f32 %v684, %v725
        %v734 = vadd.f32 %v685, %v726
        %735 = vset.pattern.permute.xlu0 2
        %736 = vperm.xlu0 %735, %v629
        %v737 = vpop.permute.xlu0 %736
        %739 = vset.pattern.permute.xlu0 2
        %740 = vperm.xlu0 %739, %v630
        %v741 = vpop.permute.xlu0 %740
        %743 = vset.pattern.permute.xlu0 2
        %744 = vperm.xlu0 %743, %v631
        %v745 = vpop.permute.xlu0 %744
        %747 = vset.pattern.permute.xlu0 2
        %748 = vperm.xlu0 %747, %v632
        %v749 = vpop.permute.xlu0 %748
        %751 = vset.pattern.permute.xlu0 2
        %752 = vperm.xlu0 %751, %v633
        %v753 = vpop.permute.xlu0 %752
        %755 = vset.pattern.permute.xlu0 2
        %756 = vperm.xlu0 %755, %v634
        %v757 = vpop.permute.xlu0 %756
        %759 = vset.pattern.permute.xlu0 2
        %760 = vperm.xlu0 %759, %v635
        %v761 = vpop.permute.xlu0 %760
        %763 = vset.pattern.permute.xlu0 2
        %764 = vperm.xlu0 %763, %v636
        %v765 = vpop.permute.xlu0 %764
        %v767 = vadd.f32 %v727, %v737
        %v768 = vadd.f32 %v728, %v741
        %v769 = vadd.f32 %v729, %v745
        %v770 = vadd.f32 %v730, %v749
        %v771 = vadd.f32 %v731, %v753
        %v772 = vadd.f32 %v732, %v757
        %v773 = vadd.f32 %v733, %v761
        %v774 = vadd.f32 %v734, %v765
        %v775 = vmax.f32 %v323, 0.0
        %v776 = vmax.f32 %v324, 0.0
        %v777 = vmax.f32 %v325, 0.0
        %v778 = vmax.f32 %v326, 0.0
        %v779 = vmax.f32 %v327, 0.0
        %v780 = vmax.f32 %v328, 0.0
        %v781 = vmax.f32 %v329, 0.0
        %v782 = vmax.f32 %v330, 0.0
        %v783 = vmax.f32 %v471, 0.0
        %v784 = vmax.f32 %v472, 0.0
        %v785 = vmax.f32 %v473, 0.0
        %v786 = vmax.f32 %v474, 0.0
        %v787 = vmax.f32 %v475, 0.0
        %v788 = vmax.f32 %v476, 0.0
        %v789 = vmax.f32 %v477, 0.0
        %v790 = vmax.f32 %v478, 0.0
        %v791 = vmax.f32 %v619, 0.0
        %v792 = vmax.f32 %v620, 0.0
        %v793 = vmax.f32 %v621, 0.0
        %v794 = vmax.f32 %v622, 0.0
        %v795 = vmax.f32 %v623, 0.0
        %v796 = vmax.f32 %v624, 0.0
        %v797 = vmax.f32 %v625, 0.0
        %v798 = vmax.f32 %v626, 0.0
        %v799 = vmax.f32 %v767, 0.0
        %v800 = vmax.f32 %v768, 0.0
        %v801 = vmax.f32 %v769, 0.0
        %v802 = vmax.f32 %v770, 0.0
        %v803 = vmax.f32 %v771, 0.0
        %v804 = vmax.f32 %v772, 0.0
        %v805 = vmax.f32 %v773, 0.0
        %v806 = vmax.f32 %v774, 0.0
        %v807 = vld [vmem:[#allocation2] sm:$0xff]
        %v808 = vld [vmem:[#allocation2 + $0x8] sm:$0xff]
        %v809 = vld [vmem:[#allocation2 + $0x10] sm:$0xff]
        %v810 = vld [vmem:[#allocation2 + $0x18] sm:$0xff]
        %v811 = vld [vmem:[#allocation2 + $0x20] sm:$0xff]
        %v812 = vld [vmem:[#allocation2 + $0x28] sm:$0xff]
        %v813 = vld [vmem:[#allocation2 + $0x30] sm:$0xff]
        %v814 = vld [vmem:[#allocation2 + $0x38] sm:$0xff]
        %v815 = vld [vmem:[#allocation2 + $0x40] sm:$0xff]
        %v816 = vld [vmem:[#allocation2 + $0x48] sm:$0xff]
        %v817 = vld [vmem:[#allocation2 + $0x50] sm:$0xff]
        %v818 = vld [vmem:[#allocation2 + $0x58] sm:$0xff]
        %v819 = vld [vmem:[#allocation2 + $0x60] sm:$0xff]
        %v820 = vld [vmem:[#allocation2 + $0x68] sm:$0xff]
        %v821 = vld [vmem:[#allocation2 + $0x70] sm:$0xff]
        %v822 = vld [vmem:[#allocation2 + $0x78] sm:$0xff]
        %v823 = vld [vmem:[#allocation2 + $0x80] sm:$0xff]
        %v824 = vld [vmem:[#allocation2 + $0x88] sm:$0xff]
        %v825 = vld [vmem:[#allocation2 + $0x90] sm:$0xff]
        %v826 = vld [vmem:[#allocation2 + $0x98] sm:$0xff]
        %v827 = vld [vmem:[#allocation2 + $0xa0] sm:$0xff]
        %v828 = vld [vmem:[#allocation2 + $0xa8] sm:$0xff]
        %v829 = vld [vmem:[#allocation2 + $0xb0] sm:$0xff]
        %v830 = vld [vmem:[#allocation2 + $0xb8] sm:$0xff]
        %v831 = vld [vmem:[#allocation2 + $0xc0] sm:$0xff]
        %v832 = vld [vmem:[#allocation2 + $0xc8] sm:$0xff]
        %v833 = vld [vmem:[#allocation2 + $0xd0] sm:$0xff]
        %v834 = vld [vmem:[#allocation2 + $0xd8] sm:$0xff]
        %v835 = vld [vmem:[#allocation2 + $0xe0] sm:$0xff]
        %v836 = vld [vmem:[#allocation2 + $0xe8] sm:$0xff]
        %v837 = vld [vmem:[#allocation2 + $0xf0] sm:$0xff]
        %v838 = vld [vmem:[#allocation2 + $0xf8] sm:$0xff]
        %v839 = vpack.c.bf16 %v776, %v775
        %v840 = vpack.c.bf16 %v778, %v777
        %v841 = vpack.c.bf16 %v780, %v779
        %v842 = vpack.c.bf16 %v782, %v781
        %v843 = vpack.c.bf16 %v784, %v783
        %v844 = vpack.c.bf16 %v786, %v785
        %v845 = vpack.c.bf16 %v788, %v787
        %v846 = vpack.c.bf16 %v790, %v789
        %v847 = vpack.c.bf16 %v792, %v791
        %v848 = vpack.c.bf16 %v794, %v793
        %v849 = vpack.c.bf16 %v796, %v795
        %v850 = vpack.c.bf16 %v798, %v797
        %v851 = vpack.c.bf16 %v800, %v799
        %v852 = vpack.c.bf16 %v802, %v801
        %v853 = vpack.c.bf16 %v804, %v803
        %v854 = vpack.c.bf16 %v806, %v805
        %v855 = vld [vmem:[%s1] sm:$0xff]
        %v856 = vld [vmem:[%s1 + $0x8] sm:$0xff]
        %v857 = vld [vmem:[%s1 + $0x10] sm:$0xff]
        %v858 = vld [vmem:[%s1 + $0x18] sm:$0xff]
        %v859 = vld [vmem:[%s1 + $0x20] sm:$0xff]
        %v860 = vld [vmem:[%s1 + $0x28] sm:$0xff]
        %v861 = vld [vmem:[%s1 + $0x30] sm:$0xff]
        %v862 = vld [vmem:[%s1 + $0x38] sm:$0xff]
        %v863 = vld [vmem:[%s1 + $0x40] sm:$0xff]
        %v864 = vld [vmem:[%s1 + $0x48] sm:$0xff]
        %v865 = vld [vmem:[%s1 + $0x50] sm:$0xff]
        %v866 = vld [vmem:[%s1 + $0x58] sm:$0xff]
        %v867 = vld [vmem:[%s1 + $0x60] sm:$0xff]
        %v868 = vld [vmem:[%s1 + $0x68] sm:$0xff]
        %v869 = vld [vmem:[%s1 + $0x70] sm:$0xff]
        %v870 = vld [vmem:[%s1 + $0x78] sm:$0xff]
        %v871 = vld [vmem:[%s1 + $0x80] sm:$0xff]
        %v872 = vld [vmem:[%s1 + $0x88] sm:$0xff]
        %v873 = vld [vmem:[%s1 + $0x90] sm:$0xff]
        %v874 = vld [vmem:[%s1 + $0x98] sm:$0xff]
        %v875 = vld [vmem:[%s1 + $0xa0] sm:$0xff]
        %v876 = vld [vmem:[%s1 + $0xa8] sm:$0xff]
        %v877 = vld [vmem:[%s1 + $0xb0] sm:$0xff]
        %v878 = vld [vmem:[%s1 + $0xb8] sm:$0xff]
        %880 = vset.pattern.permute.xlu0 3
        %881 = vperm.xlu0 %880, %v855
        %v882 = vpop.permute.xlu0 %881
        %885 = vset.pattern.permute.xlu0 3
        %886 = vperm.xlu0 %885, %v856
        %v887 = vpop.permute.xlu0 %886
        %890 = vset.pattern.permute.xlu0 3
        %891 = vperm.xlu0 %890, %v857
        %v892 = vpop.permute.xlu0 %891
        %895 = vset.pattern.permute.xlu0 3
        %896 = vperm.xlu0 %895, %v858
        %v897 = vpop.permute.xlu0 %896
        %900 = vset.pattern.permute.xlu0 3
        %901 = vperm.xlu0 %900, %v859
        %v902 = vpop.permute.xlu0 %901
        %905 = vset.pattern.permute.xlu0 3
        %906 = vperm.xlu0 %905, %v860
        %v907 = vpop.permute.xlu0 %906
        %910 = vset.pattern.permute.xlu0 3
        %911 = vperm.xlu0 %910, %v861
        %v912 = vpop.permute.xlu0 %911
        %915 = vset.pattern.permute.xlu0 3
        %916 = vperm.xlu0 %915, %v862
        %v917 = vpop.permute.xlu0 %916
        %920 = vset.pattern.permute.xlu0 3
        %921 = vperm.xlu0 %920, %v863
        %v922 = vpop.permute.xlu0 %921
        %925 = vset.pattern.permute.xlu0 3
        %926 = vperm.xlu0 %925, %v864
        %v927 = vpop.permute.xlu0 %926
        %930 = vset.pattern.permute.xlu0 3
        %931 = vperm.xlu0 %930, %v865
        %v932 = vpop.permute.xlu0 %931
        %935 = vset.pattern.permute.xlu0 3
        %936 = vperm.xlu0 %935, %v866
        %v937 = vpop.permute.xlu0 %936
        %940 = vset.pattern.permute.xlu0 3
        %941 = vperm.xlu0 %940, %v867
        %v942 = vpop.permute.xlu0 %941
        %945 = vset.pattern.permute.xlu0 3
        %946 = vperm.xlu0 %945, %v868
        %v947 = vpop.permute.xlu0 %946
        %950 = vset.pattern.permute.xlu0 3
        %951 = vperm.xlu0 %950, %v869
        %v952 = vpop.permute.xlu0 %951
        %955 = vset.pattern.permute.xlu0 3
        %956 = vperm.xlu0 %955, %v870
        %v957 = vpop.permute.xlu0 %956
        %960 = vset.pattern.permute.xlu0 3
        %961 = vperm.xlu0 %960, %v871
        %v962 = vpop.permute.xlu0 %961
        %965 = vset.pattern.permute.xlu0 3
        %966 = vperm.xlu0 %965, %v872
        %v967 = vpop.permute.xlu0 %966
        %970 = vset.pattern.permute.xlu0 3
        %971 = vperm.xlu0 %970, %v873
        %v972 = vpop.permute.xlu0 %971
        %975 = vset.pattern.permute.xlu0 3
        %976 = vperm.xlu0 %975, %v874
        %v977 = vpop.permute.xlu0 %976
        %980 = vset.pattern.permute.xlu0 3
        %981 = vperm.xlu0 %980, %v875
        %v982 = vpop.permute.xlu0 %981
        %985 = vset.pattern.permute.xlu0 3
        %986 = vperm.xlu0 %985, %v876
        %v987 = vpop.permute.xlu0 %986
        %990 = vset.pattern.permute.xlu0 3
        %991 = vperm.xlu0 %990, %v877
        %v992 = vpop.permute.xlu0 %991
        %995 = vset.pattern.permute.xlu0 3
        %996 = vperm.xlu0 %995, %v878
        %v997 = vpop.permute.xlu0 %996
        %999 = vset.pattern.permute.xlu0 3
        %1000 = vperm.xlu0 %999, %v629
        %v1001 = vpop.permute.xlu0 %1000
        %1003 = vset.pattern.permute.xlu0 3
        %1004 = vperm.xlu0 %1003, %v630
        %v1005 = vpop.permute.xlu0 %1004
        %1007 = vset.pattern.permute.xlu0 3
        %1008 = vperm.xlu0 %1007, %v631
        %v1009 = vpop.permute.xlu0 %1008
        %1011 = vset.pattern.permute.xlu0 3
        %1012 = vperm.xlu0 %1011, %v632
        %v1013 = vpop.permute.xlu0 %1012
        %1015 = vset.pattern.permute.xlu0 3
        %1016 = vperm.xlu0 %1015, %v633
        %v1017 = vpop.permute.xlu0 %1016
        %1019 = vset.pattern.permute.xlu0 3
        %1020 = vperm.xlu0 %1019, %v634
        %v1021 = vpop.permute.xlu0 %1020
        %1023 = vset.pattern.permute.xlu0 3
        %1024 = vperm.xlu0 %1023, %v635
        %v1025 = vpop.permute.xlu0 %1024
        %1027 = vset.pattern.permute.xlu0 3
        %1028 = vperm.xlu0 %1027, %v636
        %v1029 = vpop.permute.xlu0 %1028
        %v1063 = vunpack.c.l.b16 %v807
        %v1064 = vunpack.c.h.b16 %v807
        %v1065 = vunpack.c.l.b16 %v808
        %v1066 = vunpack.c.h.b16 %v808
        %v1067 = vunpack.c.l.b16 %v809
        %v1068 = vunpack.c.h.b16 %v809
        %v1069 = vunpack.c.l.b16 %v810
        %v1070 = vunpack.c.h.b16 %v810
        %v1071 = vunpack.c.l.b16 %v811
        %v1072 = vunpack.c.h.b16 %v811
        %v1073 = vunpack.c.l.b16 %v812
        %v1074 = vunpack.c.h.b16 %v812
        %v1075 = vunpack.c.l.b16 %v813
        %v1076 = vunpack.c.h.b16 %v813
        %v1077 = vunpack.c.l.b16 %v814
        %v1078 = vunpack.c.h.b16 %v814
        %v1079 = vunpack.c.l.b16 %v815
        %v1080 = vunpack.c.h.b16 %v815
        %v1081 = vunpack.c.l.b16 %v816
        %v1082 = vunpack.c.h.b16 %v816
        %v1083 = vunpack.c.l.b16 %v817
        %v1084 = vunpack.c.h.b16 %v817
        %v1085 = vunpack.c.l.b16 %v818
        %v1086 = vunpack.c.h.b16 %v818
        %v1087 = vunpack.c.l.b16 %v819
        %v1088 = vunpack.c.h.b16 %v819
        %v1089 = vunpack.c.l.b16 %v820
        %v1090 = vunpack.c.h.b16 %v820
        %v1091 = vunpack.c.l.b16 %v821
        %v1092 = vunpack.c.h.b16 %v821
        %v1093 = vunpack.c.l.b16 %v822
        %v1094 = vunpack.c.h.b16 %v822
        %v1095 = vunpack.c.l.b16 %v823
        %v1096 = vunpack.c.h.b16 %v823
        %v1097 = vunpack.c.l.b16 %v824
        %v1098 = vunpack.c.h.b16 %v824
        %v1099 = vunpack.c.l.b16 %v825
        %v1100 = vunpack.c.h.b16 %v825
        %v1101 = vunpack.c.l.b16 %v826
        %v1102 = vunpack.c.h.b16 %v826
        %v1103 = vunpack.c.l.b16 %v827
        %v1104 = vunpack.c.h.b16 %v827
        %v1105 = vunpack.c.l.b16 %v828
        %v1106 = vunpack.c.h.b16 %v828
        %v1107 = vunpack.c.l.b16 %v829
        %v1108 = vunpack.c.h.b16 %v829
        %v1109 = vunpack.c.l.b16 %v830
        %v1110 = vunpack.c.h.b16 %v830
        %v1111 = vunpack.c.l.b16 %v831
        %v1112 = vunpack.c.h.b16 %v831
        %v1113 = vunpack.c.l.b16 %v832
        %v1114 = vunpack.c.h.b16 %v832
        %v1115 = vunpack.c.l.b16 %v833
        %v1116 = vunpack.c.h.b16 %v833
        %v1117 = vunpack.c.l.b16 %v834
        %v1118 = vunpack.c.h.b16 %v834
        %v1119 = vunpack.c.l.b16 %v835
        %v1120 = vunpack.c.h.b16 %v835
        %v1121 = vunpack.c.l.b16 %v836
        %v1122 = vunpack.c.h.b16 %v836
        %v1123 = vunpack.c.l.b16 %v837
        %v1124 = vunpack.c.h.b16 %v837
        %v1125 = vunpack.c.l.b16 %v838
        %v1126 = vunpack.c.h.b16 %v838
        %v1127 = vpack.c.b16 %v1065, %v1063
        %v1128 = vpack.c.b16 %v1066, %v1064
        %v1129 = vpack.c.b16 %v1069, %v1067
        %v1130 = vpack.c.b16 %v1070, %v1068
        %v1131 = vpack.c.b16 %v1073, %v1071
        %v1132 = vpack.c.b16 %v1074, %v1072
        %v1133 = vpack.c.b16 %v1077, %v1075
        %v1134 = vpack.c.b16 %v1078, %v1076
        %v1135 = vpack.c.b16 %v1081, %v1079
        %v1136 = vpack.c.b16 %v1082, %v1080
        %v1137 = vpack.c.b16 %v1085, %v1083
        %v1138 = vpack.c.b16 %v1086, %v1084
        %v1139 = vpack.c.b16 %v1089, %v1087
        %v1140 = vpack.c.b16 %v1090, %v1088
        %v1141 = vpack.c.b16 %v1093, %v1091
        %v1142 = vpack.c.b16 %v1094, %v1092
        %v1143 = vpack.c.b16 %v1097, %v1095
        %v1144 = vpack.c.b16 %v1098, %v1096
        %v1145 = vpack.c.b16 %v1101, %v1099
        %v1146 = vpack.c.b16 %v1102, %v1100
        %v1147 = vpack.c.b16 %v1105, %v1103
        %v1148 = vpack.c.b16 %v1106, %v1104
        %v1149 = vpack.c.b16 %v1109, %v1107
        %v1150 = vpack.c.b16 %v1110, %v1108
        %v1151 = vpack.c.b16 %v1113, %v1111
        %v1152 = vpack.c.b16 %v1114, %v1112
        %v1153 = vpack.c.b16 %v1117, %v1115
        %v1154 = vpack.c.b16 %v1118, %v1116
        %v1155 = vpack.c.b16 %v1121, %v1119
        %v1156 = vpack.c.b16 %v1122, %v1120
        %v1157 = vpack.c.b16 %v1125, %v1123
        %v1158 = vpack.c.b16 %v1126, %v1124
        %1191 = vmatpush.bf16.msra.mxu0 %v846
        %1192 = vmatpush.bf16.msra.mxu0 %v845
        %1193 = vmatpush.bf16.msra.mxu0 %v844
        %1194 = vmatpush.bf16.msra.mxu0 %v843
        %1195 = vmatpush.bf16.msra.mxu0 %v842
        %1196 = vmatpush.bf16.msra.mxu0 %v841
        %1197 = vmatpush.bf16.msra.mxu0 %v840
        %1198 = vmatpush.bf16.msra.mxu0 %v839
        %1199 = vmatmul.bf16.gmra.mxu0 %v1127
        %v1200 = vpop.f32.mrf.mxu0
        %v1201 = vadd.f32 %v882, %v1200
        %v1202 = vpop.f32.mrf.mxu0
        %v1203 = vadd.f32 %v887, %v1202
        %1204 = vmatmul.bf16.gmra.mxu0 %v1129
        %v1205 = vpop.f32.mrf.mxu0
        %v1206 = vadd.f32 %v892, %v1205
        %v1207 = vpop.f32.mrf.mxu0
        %v1208 = vadd.f32 %v897, %v1207
        %1209 = vmatmul.bf16.gmra.mxu0 %v1131
        %v1210 = vpop.f32.mrf.mxu0
        %v1211 = vadd.f32 %v902, %v1210
        %v1212 = vpop.f32.mrf.mxu0
        %v1213 = vadd.f32 %v907, %v1212
        %1214 = vmatmul.bf16.gmra.mxu0 %v1133
        %v1215 = vpop.f32.mrf.mxu0
        %v1216 = vadd.f32 %v912, %v1215
        %v1217 = vpop.f32.mrf.mxu0
        %v1218 = vadd.f32 %v917, %v1217
        %1219 = vmatmul.bf16.gmra.mxu0 %v1135
        %v1220 = vpop.f32.mrf.mxu0
        %v1221 = vadd.f32 %v922, %v1220
        %v1222 = vpop.f32.mrf.mxu0
        %v1223 = vadd.f32 %v927, %v1222
        %1224 = vmatmul.bf16.gmra.mxu0 %v1137
        %v1225 = vpop.f32.mrf.mxu0
        %v1226 = vadd.f32 %v932, %v1225
        %v1227 = vpop.f32.mrf.mxu0
        %v1228 = vadd.f32 %v937, %v1227
        %1229 = vmatmul.bf16.gmra.mxu0 %v1139
        %v1230 = vpop.f32.mrf.mxu0
        %v1231 = vadd.f32 %v942, %v1230
        %v1232 = vpop.f32.mrf.mxu0
        %v1233 = vadd.f32 %v947, %v1232
        %1234 = vmatmul.bf16.gmra.mxu0 %v1141
        %v1235 = vpop.f32.mrf.mxu0
        %v1236 = vadd.f32 %v952, %v1235
        %v1237 = vpop.f32.mrf.mxu0
        %v1238 = vadd.f32 %v957, %v1237
        %1239 = vmatmul.bf16.gmra.mxu0 %v1143
        %v1240 = vpop.f32.mrf.mxu0
        %v1241 = vadd.f32 %v962, %v1240
        %v1242 = vpop.f32.mrf.mxu0
        %v1243 = vadd.f32 %v967, %v1242
        %1244 = vmatmul.bf16.gmra.mxu0 %v1145
        %v1245 = vpop.f32.mrf.mxu0
        %v1246 = vadd.f32 %v972, %v1245
        %v1247 = vpop.f32.mrf.mxu0
        %v1248 = vadd.f32 %v977, %v1247
        %1249 = vmatmul.bf16.gmra.mxu0 %v1147
        %v1250 = vpop.f32.mrf.mxu0
        %v1251 = vadd.f32 %v982, %v1250
        %v1252 = vpop.f32.mrf.mxu0
        %v1253 = vadd.f32 %v987, %v1252
        %1254 = vmatmul.bf16.gmra.mxu0 %v1149
        %v1255 = vpop.f32.mrf.mxu0
        %v1256 = vadd.f32 %v992, %v1255
        %v1257 = vpop.f32.mrf.mxu0
        %v1258 = vadd.f32 %v997, %v1257
        %1259 = vmatmul.bf16.gmra.mxu0 %v1151
        %v1260 = vpop.f32.mrf.mxu0
        %v1261 = vadd.f32 %v1001, %v1260
        %v1262 = vpop.f32.mrf.mxu0
        %v1263 = vadd.f32 %v1005, %v1262
        %1264 = vmatmul.bf16.gmra.mxu0 %v1153
        %v1265 = vpop.f32.mrf.mxu0
        %v1266 = vadd.f32 %v1009, %v1265
        %v1267 = vpop.f32.mrf.mxu0
        %v1268 = vadd.f32 %v1013, %v1267
        %1269 = vmatmul.bf16.gmra.mxu0 %v1155
        %v1270 = vpop.f32.mrf.mxu0
        %v1271 = vadd.f32 %v1017, %v1270
        %v1272 = vpop.f32.mrf.mxu0
        %v1273 = vadd.f32 %v1021, %v1272
        %1274 = vmatmul.bf16.gmra.mxu0 %v1157
        %v1275 = vpop.f32.mrf.mxu0
        %v1276 = vadd.f32 %v1025, %v1275
        %v1277 = vpop.f32.mrf.mxu0
        %v1278 = vadd.f32 %v1029, %v1277
        %1279 = vdwg.mxu0
        %1280 = vmatpush.bf16.msra.mxu0 %v854
        %1281 = vmatpush.bf16.msra.mxu0 %v853
        %1282 = vmatpush.bf16.msra.mxu0 %v852
        %1283 = vmatpush.bf16.msra.mxu0 %v851
        %1284 = vmatpush.bf16.msra.mxu0 %v850
        %1285 = vmatpush.bf16.msra.mxu0 %v849
        %1286 = vmatpush.bf16.msra.mxu0 %v848
        %1287 = vmatpush.bf16.msra.mxu0 %v847
        %1288 = vmatmul.bf16.gmra.mxu0 %v1128
        %v1289 = vpop.f32.mrf.mxu0
        %v1290 = vadd.f32 %v1201, %v1289
        %v1291 = vpop.f32.mrf.mxu0
        %v1292 = vadd.f32 %v1203, %v1291
        %1293 = vmatmul.bf16.gmra.mxu0 %v1130
        %v1294 = vpop.f32.mrf.mxu0
        %v1295 = vadd.f32 %v1206, %v1294
        %v1296 = vpop.f32.mrf.mxu0
        %v1297 = vadd.f32 %v1208, %v1296
        %1298 = vmatmul.bf16.gmra.mxu0 %v1132
        %v1299 = vpop.f32.mrf.mxu0
        %v1300 = vadd.f32 %v1211, %v1299
        %v1301 = vpop.f32.mrf.mxu0
        %v1302 = vadd.f32 %v1213, %v1301
        %1303 = vmatmul.bf16.gmra.mxu0 %v1134
        %v1304 = vpop.f32.mrf.mxu0
        %v1305 = vadd.f32 %v1216, %v1304
        %v1306 = vpop.f32.mrf.mxu0
        %v1307 = vadd.f32 %v1218, %v1306
        %1308 = vmatmul.bf16.gmra.mxu0 %v1136
        %v1309 = vpop.f32.mrf.mxu0
        %v1310 = vadd.f32 %v1221, %v1309
        %v1311 = vpop.f32.mrf.mxu0
        %v1312 = vadd.f32 %v1223, %v1311
        %1313 = vmatmul.bf16.gmra.mxu0 %v1138
        %v1314 = vpop.f32.mrf.mxu0
        %v1315 = vadd.f32 %v1226, %v1314
        %v1316 = vpop.f32.mrf.mxu0
        %v1317 = vadd.f32 %v1228, %v1316
        %1318 = vmatmul.bf16.gmra.mxu0 %v1140
        %v1319 = vpop.f32.mrf.mxu0
        %v1320 = vadd.f32 %v1231, %v1319
        %v1321 = vpop.f32.mrf.mxu0
        %v1322 = vadd.f32 %v1233, %v1321
        %1323 = vmatmul.bf16.gmra.mxu0 %v1142
        %v1324 = vpop.f32.mrf.mxu0
        %v1325 = vadd.f32 %v1236, %v1324
        %v1326 = vpop.f32.mrf.mxu0
        %v1327 = vadd.f32 %v1238, %v1326
        %1328 = vmatmul.bf16.gmra.mxu0 %v1144
        %v1329 = vpop.f32.mrf.mxu0
        %v1330 = vadd.f32 %v1241, %v1329
        %v1331 = vpop.f32.mrf.mxu0
        %v1332 = vadd.f32 %v1243, %v1331
        %1333 = vmatmul.bf16.gmra.mxu0 %v1146
        %v1334 = vpop.f32.mrf.mxu0
        %v1335 = vadd.f32 %v1246, %v1334
        %v1336 = vpop.f32.mrf.mxu0
        %v1337 = vadd.f32 %v1248, %v1336
        %1338 = vmatmul.bf16.gmra.mxu0 %v1148
        %v1339 = vpop.f32.mrf.mxu0
        %v1340 = vadd.f32 %v1251, %v1339
        %v1341 = vpop.f32.mrf.mxu0
        %v1342 = vadd.f32 %v1253, %v1341
        %1343 = vmatmul.bf16.gmra.mxu0 %v1150
        %v1344 = vpop.f32.mrf.mxu0
        %v1345 = vadd.f32 %v1256, %v1344
        %v1346 = vpop.f32.mrf.mxu0
        %v1347 = vadd.f32 %v1258, %v1346
        %1348 = vmatmul.bf16.gmra.mxu0 %v1152
        %v1349 = vpop.f32.mrf.mxu0
        %v1350 = vadd.f32 %v1261, %v1349
        %v1351 = vpop.f32.mrf.mxu0
        %v1352 = vadd.f32 %v1263, %v1351
        %1353 = vmatmul.bf16.gmra.mxu0 %v1154
        %v1354 = vpop.f32.mrf.mxu0
        %v1355 = vadd.f32 %v1266, %v1354
        %v1356 = vpop.f32.mrf.mxu0
        %v1357 = vadd.f32 %v1268, %v1356
        %1358 = vmatmul.bf16.gmra.mxu0 %v1156
        %v1359 = vpop.f32.mrf.mxu0
        %v1360 = vadd.f32 %v1271, %v1359
        %v1361 = vpop.f32.mrf.mxu0
        %v1362 = vadd.f32 %v1273, %v1361
        %1363 = vmatmul.bf16.gmra.mxu0 %v1158
        %v1364 = vpop.f32.mrf.mxu0
        %v1365 = vadd.f32 %v1276, %v1364
        %v1366 = vpop.f32.mrf.mxu0
        %v1367 = vadd.f32 %v1278, %v1366
        %1368 = vdwg.mxu0
        %v1369 = vmax.f32 %v1290, 0.0
        %v1370 = vmax.f32 %v1292, 0.0
        %v1371 = vmax.f32 %v1295, 0.0
        %v1372 = vmax.f32 %v1297, 0.0
        %v1373 = vmax.f32 %v1300, 0.0
        %v1374 = vmax.f32 %v1302, 0.0
        %v1375 = vmax.f32 %v1305, 0.0
        %v1376 = vmax.f32 %v1307, 0.0
        %v1377 = vmax.f32 %v1310, 0.0
        %v1378 = vmax.f32 %v1312, 0.0
        %v1379 = vmax.f32 %v1315, 0.0
        %v1380 = vmax.f32 %v1317, 0.0
        %v1381 = vmax.f32 %v1320, 0.0
        %v1382 = vmax.f32 %v1322, 0.0
        %v1383 = vmax.f32 %v1325, 0.0
        %v1384 = vmax.f32 %v1327, 0.0
        %v1385 = vmax.f32 %v1330, 0.0
        %v1386 = vmax.f32 %v1332, 0.0
        %v1387 = vmax.f32 %v1335, 0.0
        %v1388 = vmax.f32 %v1337, 0.0
        %v1389 = vmax.f32 %v1340, 0.0
        %v1390 = vmax.f32 %v1342, 0.0
        %v1391 = vmax.f32 %v1345, 0.0
        %v1392 = vmax.f32 %v1347, 0.0
        %v1393 = vmax.f32 %v1350, 0.0
        %v1394 = vmax.f32 %v1352, 0.0
        %v1395 = vmax.f32 %v1355, 0.0
        %v1396 = vmax.f32 %v1357, 0.0
        %v1397 = vmax.f32 %v1360, 0.0
        %v1398 = vmax.f32 %v1362, 0.0
        %v1399 = vmax.f32 %v1365, 0.0
        %v1400 = vmax.f32 %v1367, 0.0
        %s1401 = scalar_lea.vmem [#allocation2], 256
        %v1402 = vld [vmem:[%s1401] sm:$0xff]
        %v1403 = vld [vmem:[%s1401 + $0x8] sm:$0xff]
        %v1404 = vld [vmem:[%s1401 + $0x10] sm:$0xff]
        %v1405 = vld [vmem:[%s1401 + $0x18] sm:$0xff]
        %v1406 = vld [vmem:[%s1401 + $0x20] sm:$0xff]
        %v1407 = vld [vmem:[%s1401 + $0x28] sm:$0xff]
        %v1408 = vld [vmem:[%s1401 + $0x30] sm:$0xff]
        %v1409 = vld [vmem:[%s1401 + $0x38] sm:$0xff]
        %v1410 = vld [vmem:[%s1401 + $0x40] sm:$0xff]
        %v1411 = vld [vmem:[%s1401 + $0x48] sm:$0xff]
        %v1412 = vld [vmem:[%s1401 + $0x50] sm:$0xff]
        %v1413 = vld [vmem:[%s1401 + $0x58] sm:$0xff]
        %v1414 = vld [vmem:[%s1401 + $0x60] sm:$0xff]
        %v1415 = vld [vmem:[%s1401 + $0x68] sm:$0xff]
        %v1416 = vld [vmem:[%s1401 + $0x70] sm:$0xff]
        %v1417 = vld [vmem:[%s1401 + $0x78] sm:$0xff]
        %v1418 = vld [vmem:[%s1401 + $0x80] sm:$0xff]
        %v1419 = vld [vmem:[%s1401 + $0x88] sm:$0xff]
        %v1420 = vld [vmem:[%s1401 + $0x90] sm:$0xff]
        %v1421 = vld [vmem:[%s1401 + $0x98] sm:$0xff]
        %v1422 = vld [vmem:[%s1401 + $0xa0] sm:$0xff]
        %v1423 = vld [vmem:[%s1401 + $0xa8] sm:$0xff]
        %v1424 = vld [vmem:[%s1401 + $0xb0] sm:$0xff]
        %v1425 = vld [vmem:[%s1401 + $0xb8] sm:$0xff]
        %v1426 = vld [vmem:[%s1401 + $0xc0] sm:$0xff]
        %v1427 = vld [vmem:[%s1401 + $0xc8] sm:$0xff]
        %v1428 = vld [vmem:[%s1401 + $0xd0] sm:$0xff]
        %v1429 = vld [vmem:[%s1401 + $0xd8] sm:$0xff]
        %v1430 = vld [vmem:[%s1401 + $0xe0] sm:$0xff]
        %v1431 = vld [vmem:[%s1401 + $0xe8] sm:$0xff]
        %v1432 = vld [vmem:[%s1401 + $0xf0] sm:$0xff]
        %v1433 = vld [vmem:[%s1401 + $0xf8] sm:$0xff]
        %v1434 = vpack.c.bf16 %v1370, %v1369
        %v1435 = vpack.c.bf16 %v1372, %v1371
        %v1436 = vpack.c.bf16 %v1374, %v1373
        %v1437 = vpack.c.bf16 %v1376, %v1375
        %v1438 = vpack.c.bf16 %v1378, %v1377
        %v1439 = vpack.c.bf16 %v1380, %v1379
        %v1440 = vpack.c.bf16 %v1382, %v1381
        %v1441 = vpack.c.bf16 %v1384, %v1383
        %v1442 = vpack.c.bf16 %v1386, %v1385
        %v1443 = vpack.c.bf16 %v1388, %v1387
        %v1444 = vpack.c.bf16 %v1390, %v1389
        %v1445 = vpack.c.bf16 %v1392, %v1391
        %v1446 = vpack.c.bf16 %v1394, %v1393
        %v1447 = vpack.c.bf16 %v1396, %v1395
        %v1448 = vpack.c.bf16 %v1398, %v1397
        %v1449 = vpack.c.bf16 %v1400, %v1399
        %1450 = vset.pattern.permute.xlu0 4
        %1451 = vperm.xlu0 %1450, %v855
        %v1452 = vpop.permute.xlu0 %1451
        %1454 = vset.pattern.permute.xlu0 4
        %1455 = vperm.xlu0 %1454, %v856
        %v1456 = vpop.permute.xlu0 %1455
        %1458 = vset.pattern.permute.xlu0 4
        %1459 = vperm.xlu0 %1458, %v857
        %v1460 = vpop.permute.xlu0 %1459
        %1462 = vset.pattern.permute.xlu0 4
        %1463 = vperm.xlu0 %1462, %v858
        %v1464 = vpop.permute.xlu0 %1463
        %1466 = vset.pattern.permute.xlu0 4
        %1467 = vperm.xlu0 %1466, %v859
        %v1468 = vpop.permute.xlu0 %1467
        %1470 = vset.pattern.permute.xlu0 4
        %1471 = vperm.xlu0 %1470, %v860
        %v1472 = vpop.permute.xlu0 %1471
        %1474 = vset.pattern.permute.xlu0 4
        %1475 = vperm.xlu0 %1474, %v861
        %v1476 = vpop.permute.xlu0 %1475
        %1478 = vset.pattern.permute.xlu0 4
        %1479 = vperm.xlu0 %1478, %v862
        %v1480 = vpop.permute.xlu0 %1479
        %1482 = vset.pattern.permute.xlu0 4
        %1483 = vperm.xlu0 %1482, %v863
        %v1484 = vpop.permute.xlu0 %1483
        %1486 = vset.pattern.permute.xlu0 4
        %1487 = vperm.xlu0 %1486, %v864
        %v1488 = vpop.permute.xlu0 %1487
        %1490 = vset.pattern.permute.xlu0 4
        %1491 = vperm.xlu0 %1490, %v865
        %v1492 = vpop.permute.xlu0 %1491
        %1494 = vset.pattern.permute.xlu0 4
        %1495 = vperm.xlu0 %1494, %v866
        %v1496 = vpop.permute.xlu0 %1495
        %1498 = vset.pattern.permute.xlu0 4
        %1499 = vperm.xlu0 %1498, %v867
        %v1500 = vpop.permute.xlu0 %1499
        %1502 = vset.pattern.permute.xlu0 4
        %1503 = vperm.xlu0 %1502, %v868
        %v1504 = vpop.permute.xlu0 %1503
        %1506 = vset.pattern.permute.xlu0 4
        %1507 = vperm.xlu0 %1506, %v869
        %v1508 = vpop.permute.xlu0 %1507
        %1510 = vset.pattern.permute.xlu0 4
        %1511 = vperm.xlu0 %1510, %v870
        %v1512 = vpop.permute.xlu0 %1511
        %1514 = vset.pattern.permute.xlu0 4
        %1515 = vperm.xlu0 %1514, %v871
        %v1516 = vpop.permute.xlu0 %1515
        %1518 = vset.pattern.permute.xlu0 4
        %1519 = vperm.xlu0 %1518, %v872
        %v1520 = vpop.permute.xlu0 %1519
        %1522 = vset.pattern.permute.xlu0 4
        %1523 = vperm.xlu0 %1522, %v873
        %v1524 = vpop.permute.xlu0 %1523
        %1526 = vset.pattern.permute.xlu0 4
        %1527 = vperm.xlu0 %1526, %v874
        %v1528 = vpop.permute.xlu0 %1527
        %1530 = vset.pattern.permute.xlu0 4
        %1531 = vperm.xlu0 %1530, %v875
        %v1532 = vpop.permute.xlu0 %1531
        %1534 = vset.pattern.permute.xlu0 4
        %1535 = vperm.xlu0 %1534, %v876
        %v1536 = vpop.permute.xlu0 %1535
        %1538 = vset.pattern.permute.xlu0 4
        %1539 = vperm.xlu0 %1538, %v877
        %v1540 = vpop.permute.xlu0 %1539
        %1542 = vset.pattern.permute.xlu0 4
        %1543 = vperm.xlu0 %1542, %v878
        %v1544 = vpop.permute.xlu0 %1543
        %1546 = vset.pattern.permute.xlu0 4
        %1547 = vperm.xlu0 %1546, %v629
        %v1548 = vpop.permute.xlu0 %1547
        %1550 = vset.pattern.permute.xlu0 4
        %1551 = vperm.xlu0 %1550, %v630
        %v1552 = vpop.permute.xlu0 %1551
        %1554 = vset.pattern.permute.xlu0 4
        %1555 = vperm.xlu0 %1554, %v631
        %v1556 = vpop.permute.xlu0 %1555
        %1558 = vset.pattern.permute.xlu0 4
        %1559 = vperm.xlu0 %1558, %v632
        %v1560 = vpop.permute.xlu0 %1559
        %1562 = vset.pattern.permute.xlu0 4
        %1563 = vperm.xlu0 %1562, %v633
        %v1564 = vpop.permute.xlu0 %1563
        %1566 = vset.pattern.permute.xlu0 4
        %1567 = vperm.xlu0 %1566, %v634
        %v1568 = vpop.permute.xlu0 %1567
        %1570 = vset.pattern.permute.xlu0 4
        %1571 = vperm.xlu0 %1570, %v635
        %v1572 = vpop.permute.xlu0 %1571
        %1574 = vset.pattern.permute.xlu0 4
        %1575 = vperm.xlu0 %1574, %v636
        %v1576 = vpop.permute.xlu0 %1575
        %v1610 = vunpack.c.l.b16 %v1402
        %v1611 = vunpack.c.h.b16 %v1402
        %v1612 = vunpack.c.l.b16 %v1403
        %v1613 = vunpack.c.h.b16 %v1403
        %v1614 = vunpack.c.l.b16 %v1404
        %v1615 = vunpack.c.h.b16 %v1404
        %v1616 = vunpack.c.l.b16 %v1405
        %v1617 = vunpack.c.h.b16 %v1405
        %v1618 = vunpack.c.l.b16 %v1406
        %v1619 = vunpack.c.h.b16 %v1406
        %v1620 = vunpack.c.l.b16 %v1407
        %v1621 = vunpack.c.h.b16 %v1407
        %v1622 = vunpack.c.l.b16 %v1408
        %v1623 = vunpack.c.h.b16 %v1408
        %v1624 = vunpack.c.l.b16 %v1409
        %v1625 = vunpack.c.h.b16 %v1409
        %v1626 = vunpack.c.l.b16 %v1410
        %v1627 = vunpack.c.h.b16 %v1410
        %v1628 = vunpack.c.l.b16 %v1411
        %v1629 = vunpack.c.h.b16 %v1411
        %v1630 = vunpack.c.l.b16 %v1412
        %v1631 = vunpack.c.h.b16 %v1412
        %v1632 = vunpack.c.l.b16 %v1413
        %v1633 = vunpack.c.h.b16 %v1413
        %v1634 = vunpack.c.l.b16 %v1414
        %v1635 = vunpack.c.h.b16 %v1414
        %v1636 = vunpack.c.l.b16 %v1415
        %v1637 = vunpack.c.h.b16 %v1415
        %v1638 = vunpack.c.l.b16 %v1416
        %v1639 = vunpack.c.h.b16 %v1416
        %v1640 = vunpack.c.l.b16 %v1417
        %v1641 = vunpack.c.h.b16 %v1417
        %v1642 = vunpack.c.l.b16 %v1418
        %v1643 = vunpack.c.h.b16 %v1418
        %v1644 = vunpack.c.l.b16 %v1419
        %v1645 = vunpack.c.h.b16 %v1419
        %v1646 = vunpack.c.l.b16 %v1420
        %v1647 = vunpack.c.h.b16 %v1420
        %v1648 = vunpack.c.l.b16 %v1421
        %v1649 = vunpack.c.h.b16 %v1421
        %v1650 = vunpack.c.l.b16 %v1422
        %v1651 = vunpack.c.h.b16 %v1422
        %v1652 = vunpack.c.l.b16 %v1423
        %v1653 = vunpack.c.h.b16 %v1423
        %v1654 = vunpack.c.l.b16 %v1424
        %v1655 = vunpack.c.h.b16 %v1424
        %v1656 = vunpack.c.l.b16 %v1425
        %v1657 = vunpack.c.h.b16 %v1425
        %v1658 = vunpack.c.l.b16 %v1426
        %v1659 = vunpack.c.h.b16 %v1426
        %v1660 = vunpack.c.l.b16 %v1427
        %v1661 = vunpack.c.h.b16 %v1427
        %v1662 = vunpack.c.l.b16 %v1428
        %v1663 = vunpack.c.h.b16 %v1428
        %v1664 = vunpack.c.l.b16 %v1429
        %v1665 = vunpack.c.h.b16 %v1429
        %v1666 = vunpack.c.l.b16 %v1430
        %v1667 = vunpack.c.h.b16 %v1430
        %v1668 = vunpack.c.l.b16 %v1431
        %v1669 = vunpack.c.h.b16 %v1431
        %v1670 = vunpack.c.l.b16 %v1432
        %v1671 = vunpack.c.h.b16 %v1432
        %v1672 = vunpack.c.l.b16 %v1433
        %v1673 = vunpack.c.h.b16 %v1433
        %v1674 = vpack.c.b16 %v1612, %v1610
        %v1675 = vpack.c.b16 %v1613, %v1611
        %v1676 = vpack.c.b16 %v1616, %v1614
        %v1677 = vpack.c.b16 %v1617, %v1615
        %v1678 = vpack.c.b16 %v1620, %v1618
        %v1679 = vpack.c.b16 %v1621, %v1619
        %v1680 = vpack.c.b16 %v1624, %v1622
        %v1681 = vpack.c.b16 %v1625, %v1623
        %v1682 = vpack.c.b16 %v1628, %v1626
        %v1683 = vpack.c.b16 %v1629, %v1627
        %v1684 = vpack.c.b16 %v1632, %v1630
        %v1685 = vpack.c.b16 %v1633, %v1631
        %v1686 = vpack.c.b16 %v1636, %v1634
        %v1687 = vpack.c.b16 %v1637, %v1635
        %v1688 = vpack.c.b16 %v1640, %v1638
        %v1689 = vpack.c.b16 %v1641, %v1639
        %v1690 = vpack.c.b16 %v1644, %v1642
        %v1691 = vpack.c.b16 %v1645, %v1643
        %v1692 = vpack.c.b16 %v1648, %v1646
        %v1693 = vpack.c.b16 %v1649, %v1647
        %v1694 = vpack.c.b16 %v1652, %v1650
        %v1695 = vpack.c.b16 %v1653, %v1651
        %v1696 = vpack.c.b16 %v1656, %v1654
        %v1697 = vpack.c.b16 %v1657, %v1655
        %v1698 = vpack.c.b16 %v1660, %v1658
        %v1699 = vpack.c.b16 %v1661, %v1659
        %v1700 = vpack.c.b16 %v1664, %v1662
        %v1701 = vpack.c.b16 %v1665, %v1663
        %v1702 = vpack.c.b16 %v1668, %v1666
        %v1703 = vpack.c.b16 %v1669, %v1667
        %v1704 = vpack.c.b16 %v1672, %v1670
        %v1705 = vpack.c.b16 %v1673, %v1671
        %1738 = vmatpush.bf16.msra.mxu0 %v1441
        %1739 = vmatpush.bf16.msra.mxu0 %v1440
        %1740 = vmatpush.bf16.msra.mxu0 %v1439
        %1741 = vmatpush.bf16.msra.mxu0 %v1438
        %1742 = vmatpush.bf16.msra.mxu0 %v1437
        %1743 = vmatpush.bf16.msra.mxu0 %v1436
        %1744 = vmatpush.bf16.msra.mxu0 %v1435
        %1745 = vmatpush.bf16.msra.mxu0 %v1434
        %1746 = vmatmul.bf16.gmra.mxu0 %v1674
        %v1747 = vpop.f32.mrf.mxu0
        %v1748 = vadd.f32 %v1452, %v1747
        %v1749 = vpop.f32.mrf.mxu0
        %v1750 = vadd.f32 %v1456, %v1749
        %1751 = vmatmul.bf16.gmra.mxu0 %v1676
        %v1752 = vpop.f32.mrf.mxu0
        %v1753 = vadd.f32 %v1460, %v1752
        %v1754 = vpop.f32.mrf.mxu0
        %v1755 = vadd.f32 %v1464, %v1754
        %1756 = vmatmul.bf16.gmra.mxu0 %v1678
        %v1757 = vpop.f32.mrf.mxu0
        %v1758 = vadd.f32 %v1468, %v1757
        %v1759 = vpop.f32.mrf.mxu0
        %v1760 = vadd.f32 %v1472, %v1759
        %1761 = vmatmul.bf16.gmra.mxu0 %v1680
        %v1762 = vpop.f32.mrf.mxu0
        %v1763 = vadd.f32 %v1476, %v1762
        %v1764 = vpop.f32.mrf.mxu0
        %v1765 = vadd.f32 %v1480, %v1764
        %1766 = vmatmul.bf16.gmra.mxu0 %v1682
        %v1767 = vpop.f32.mrf.mxu0
        %v1768 = vadd.f32 %v1484, %v1767
        %v1769 = vpop.f32.mrf.mxu0
        %v1770 = vadd.f32 %v1488, %v1769
        %1771 = vmatmul.bf16.gmra.mxu0 %v1684
        %v1772 = vpop.f32.mrf.mxu0
        %v1773 = vadd.f32 %v1492, %v1772
        %v1774 = vpop.f32.mrf.mxu0
        %v1775 = vadd.f32 %v1496, %v1774
        %1776 = vmatmul.bf16.gmra.mxu0 %v1686
        %v1777 = vpop.f32.mrf.mxu0
        %v1778 = vadd.f32 %v1500, %v1777
        %v1779 = vpop.f32.mrf.mxu0
        %v1780 = vadd.f32 %v1504, %v1779
        %1781 = vmatmul.bf16.gmra.mxu0 %v1688
        %v1782 = vpop.f32.mrf.mxu0
        %v1783 = vadd.f32 %v1508, %v1782
        %v1784 = vpop.f32.mrf.mxu0
        %v1785 = vadd.f32 %v1512, %v1784
        %1786 = vmatmul.bf16.gmra.mxu0 %v1690
        %v1787 = vpop.f32.mrf.mxu0
        %v1788 = vadd.f32 %v1516, %v1787
        %v1789 = vpop.f32.mrf.mxu0
        %v1790 = vadd.f32 %v1520, %v1789
        %1791 = vmatmul.bf16.gmra.mxu0 %v1692
        %v1792 = vpop.f32.mrf.mxu0
        %v1793 = vadd.f32 %v1524, %v1792
        %v1794 = vpop.f32.mrf.mxu0
        %v1795 = vadd.f32 %v1528, %v1794
        %1796 = vmatmul.bf16.gmra.mxu0 %v1694
        %v1797 = vpop.f32.mrf.mxu0
        %v1798 = vadd.f32 %v1532, %v1797
        %v1799 = vpop.f32.mrf.mxu0
        %v1800 = vadd.f32 %v1536, %v1799
        %1801 = vmatmul.bf16.gmra.mxu0 %v1696
        %v1802 = vpop.f32.mrf.mxu0
        %v1803 = vadd.f32 %v1540, %v1802
        %v1804 = vpop.f32.mrf.mxu0
        %v1805 = vadd.f32 %v1544, %v1804
        %1806 = vmatmul.bf16.gmra.mxu0 %v1698
        %v1807 = vpop.f32.mrf.mxu0
        %v1808 = vadd.f32 %v1548, %v1807
        %v1809 = vpop.f32.mrf.mxu0
        %v1810 = vadd.f32 %v1552, %v1809
        %1811 = vmatmul.bf16.gmra.mxu0 %v1700
        %v1812 = vpop.f32.mrf.mxu0
        %v1813 = vadd.f32 %v1556, %v1812
        %v1814 = vpop.f32.mrf.mxu0
        %v1815 = vadd.f32 %v1560, %v1814
        %1816 = vmatmul.bf16.gmra.mxu0 %v1702
        %v1817 = vpop.f32.mrf.mxu0
        %v1818 = vadd.f32 %v1564, %v1817
        %v1819 = vpop.f32.mrf.mxu0
        %v1820 = vadd.f32 %v1568, %v1819
        %1821 = vmatmul.bf16.gmra.mxu0 %v1704
        %v1822 = vpop.f32.mrf.mxu0
        %v1823 = vadd.f32 %v1572, %v1822
        %v1824 = vpop.f32.mrf.mxu0
        %v1825 = vadd.f32 %v1576, %v1824
        %1826 = vdwg.mxu0
        %1827 = vmatpush.bf16.msra.mxu0 %v1449
        %1828 = vmatpush.bf16.msra.mxu0 %v1448
        %1829 = vmatpush.bf16.msra.mxu0 %v1447
        %1830 = vmatpush.bf16.msra.mxu0 %v1446
        %1831 = vmatpush.bf16.msra.mxu0 %v1445
        %1832 = vmatpush.bf16.msra.mxu0 %v1444
        %1833 = vmatpush.bf16.msra.mxu0 %v1443
        %1834 = vmatpush.bf16.msra.mxu0 %v1442
        %1835 = vmatmul.bf16.gmra.mxu0 %v1675
        %v1836 = vpop.f32.mrf.mxu0
        %v1837 = vadd.f32 %v1748, %v1836
        %v1838 = vpop.f32.mrf.mxu0
        %v1839 = vadd.f32 %v1750, %v1838
        %1840 = vmatmul.bf16.gmra.mxu0 %v1677
        %v1841 = vpop.f32.mrf.mxu0
        %v1842 = vadd.f32 %v1753, %v1841
        %v1843 = vpop.f32.mrf.mxu0
        %v1844 = vadd.f32 %v1755, %v1843
        %1845 = vmatmul.bf16.gmra.mxu0 %v1679
        %v1846 = vpop.f32.mrf.mxu0
        %v1847 = vadd.f32 %v1758, %v1846
        %v1848 = vpop.f32.mrf.mxu0
        %v1849 = vadd.f32 %v1760, %v1848
        %1850 = vmatmul.bf16.gmra.mxu0 %v1681
        %v1851 = vpop.f32.mrf.mxu0
        %v1852 = vadd.f32 %v1763, %v1851
        %v1853 = vpop.f32.mrf.mxu0
        %v1854 = vadd.f32 %v1765, %v1853
        %1855 = vmatmul.bf16.gmra.mxu0 %v1683
        %v1856 = vpop.f32.mrf.mxu0
        %v1857 = vadd.f32 %v1768, %v1856
        %v1858 = vpop.f32.mrf.mxu0
        %v1859 = vadd.f32 %v1770, %v1858
        %1860 = vmatmul.bf16.gmra.mxu0 %v1685
        %v1861 = vpop.f32.mrf.mxu0
        %v1862 = vadd.f32 %v1773, %v1861
        %v1863 = vpop.f32.mrf.mxu0
        %v1864 = vadd.f32 %v1775, %v1863
        %1865 = vmatmul.bf16.gmra.mxu0 %v1687
        %v1866 = vpop.f32.mrf.mxu0
        %v1867 = vadd.f32 %v1778, %v1866
        %v1868 = vpop.f32.mrf.mxu0
        %v1869 = vadd.f32 %v1780, %v1868
        %1870 = vmatmul.bf16.gmra.mxu0 %v1689
        %v1871 = vpop.f32.mrf.mxu0
        %v1872 = vadd.f32 %v1783, %v1871
        %v1873 = vpop.f32.mrf.mxu0
        %v1874 = vadd.f32 %v1785, %v1873
        %1875 = vmatmul.bf16.gmra.mxu0 %v1691
        %v1876 = vpop.f32.mrf.mxu0
        %v1877 = vadd.f32 %v1788, %v1876
        %v1878 = vpop.f32.mrf.mxu0
        %v1879 = vadd.f32 %v1790, %v1878
        %1880 = vmatmul.bf16.gmra.mxu0 %v1693
        %v1881 = vpop.f32.mrf.mxu0
        %v1882 = vadd.f32 %v1793, %v1881
        %v1883 = vpop.f32.mrf.mxu0
        %v1884 = vadd.f32 %v1795, %v1883
        %1885 = vmatmul.bf16.gmra.mxu0 %v1695
        %v1886 = vpop.f32.mrf.mxu0
        %v1887 = vadd.f32 %v1798, %v1886
        %v1888 = vpop.f32.mrf.mxu0
        %v1889 = vadd.f32 %v1800, %v1888
        %1890 = vmatmul.bf16.gmra.mxu0 %v1697
        %v1891 = vpop.f32.mrf.mxu0
        %v1892 = vadd.f32 %v1803, %v1891
        %v1893 = vpop.f32.mrf.mxu0
        %v1894 = vadd.f32 %v1805, %v1893
        %1895 = vmatmul.bf16.gmra.mxu0 %v1699
        %v1896 = vpop.f32.mrf.mxu0
        %v1897 = vadd.f32 %v1808, %v1896
        %v1898 = vpop.f32.mrf.mxu0
        %v1899 = vadd.f32 %v1810, %v1898
        %1900 = vmatmul.bf16.gmra.mxu0 %v1701
        %v1901 = vpop.f32.mrf.mxu0
        %v1902 = vadd.f32 %v1813, %v1901
        %v1903 = vpop.f32.mrf.mxu0
        %v1904 = vadd.f32 %v1815, %v1903
        %1905 = vmatmul.bf16.gmra.mxu0 %v1703
        %v1906 = vpop.f32.mrf.mxu0
        %v1907 = vadd.f32 %v1818, %v1906
        %v1908 = vpop.f32.mrf.mxu0
        %v1909 = vadd.f32 %v1820, %v1908
        %1910 = vmatmul.bf16.gmra.mxu0 %v1705
        %v1911 = vpop.f32.mrf.mxu0
        %v1912 = vadd.f32 %v1823, %v1911
        %v1913 = vpop.f32.mrf.mxu0
        %v1914 = vadd.f32 %v1825, %v1913
        %1915 = vdwg.mxu0
        %v1916 = vmax.f32 %v1837, 0.0
        %v1917 = vmax.f32 %v1839, 0.0
        %v1918 = vmax.f32 %v1842, 0.0
        %v1919 = vmax.f32 %v1844, 0.0
        %v1920 = vmax.f32 %v1847, 0.0
        %v1921 = vmax.f32 %v1849, 0.0
        %v1922 = vmax.f32 %v1852, 0.0
        %v1923 = vmax.f32 %v1854, 0.0
        %v1924 = vmax.f32 %v1857, 0.0
        %v1925 = vmax.f32 %v1859, 0.0
        %v1926 = vmax.f32 %v1862, 0.0
        %v1927 = vmax.f32 %v1864, 0.0
        %v1928 = vmax.f32 %v1867, 0.0
        %v1929 = vmax.f32 %v1869, 0.0
        %v1930 = vmax.f32 %v1872, 0.0
        %v1931 = vmax.f32 %v1874, 0.0
        %v1932 = vmax.f32 %v1877, 0.0
        %v1933 = vmax.f32 %v1879, 0.0
        %v1934 = vmax.f32 %v1882, 0.0
        %v1935 = vmax.f32 %v1884, 0.0
        %v1936 = vmax.f32 %v1887, 0.0
        %v1937 = vmax.f32 %v1889, 0.0
        %v1938 = vmax.f32 %v1892, 0.0
        %v1939 = vmax.f32 %v1894, 0.0
        %v1940 = vmax.f32 %v1897, 0.0
        %v1941 = vmax.f32 %v1899, 0.0
        %v1942 = vmax.f32 %v1902, 0.0
        %v1943 = vmax.f32 %v1904, 0.0
        %v1944 = vmax.f32 %v1907, 0.0
        %v1945 = vmax.f32 %v1909, 0.0
        %v1946 = vmax.f32 %v1912, 0.0
        %v1947 = vmax.f32 %v1914, 0.0
        %s1948 = scalar_lea.vmem [#allocation2], 512
        %v1949 = vld [vmem:[%s1948] sm:$0xff]
        %v1950 = vld [vmem:[%s1948 + $0x8] sm:$0xff]
        %v1951 = vld [vmem:[%s1948 + $0x10] sm:$0xff]
        %v1952 = vld [vmem:[%s1948 + $0x18] sm:$0xff]
        %v1953 = vld [vmem:[%s1948 + $0x20] sm:$0xff]
        %v1954 = vld [vmem:[%s1948 + $0x28] sm:$0xff]
        %v1955 = vld [vmem:[%s1948 + $0x30] sm:$0xff]
        %v1956 = vld [vmem:[%s1948 + $0x38] sm:$0xff]
        %v1957 = vld [vmem:[%s1948 + $0x40] sm:$0xff]
        %v1958 = vld [vmem:[%s1948 + $0x48] sm:$0xff]
        %v1959 = vld [vmem:[%s1948 + $0x50] sm:$0xff]
        %v1960 = vld [vmem:[%s1948 + $0x58] sm:$0xff]
        %v1961 = vld [vmem:[%s1948 + $0x60] sm:$0xff]
        %v1962 = vld [vmem:[%s1948 + $0x68] sm:$0xff]
        %v1963 = vld [vmem:[%s1948 + $0x70] sm:$0xff]
        %v1964 = vld [vmem:[%s1948 + $0x78] sm:$0xff]
        %v1965 = vld [vmem:[%s1948 + $0x80] sm:$0xff]
        %v1966 = vld [vmem:[%s1948 + $0x88] sm:$0xff]
        %v1967 = vld [vmem:[%s1948 + $0x90] sm:$0xff]
        %v1968 = vld [vmem:[%s1948 + $0x98] sm:$0xff]
        %v1969 = vld [vmem:[%s1948 + $0xa0] sm:$0xff]
        %v1970 = vld [vmem:[%s1948 + $0xa8] sm:$0xff]
        %v1971 = vld [vmem:[%s1948 + $0xb0] sm:$0xff]
        %v1972 = vld [vmem:[%s1948 + $0xb8] sm:$0xff]
        %v1973 = vld [vmem:[%s1948 + $0xc0] sm:$0xff]
        %v1974 = vld [vmem:[%s1948 + $0xc8] sm:$0xff]
        %v1975 = vld [vmem:[%s1948 + $0xd0] sm:$0xff]
        %v1976 = vld [vmem:[%s1948 + $0xd8] sm:$0xff]
        %v1977 = vld [vmem:[%s1948 + $0xe0] sm:$0xff]
        %v1978 = vld [vmem:[%s1948 + $0xe8] sm:$0xff]
        %v1979 = vld [vmem:[%s1948 + $0xf0] sm:$0xff]
        %v1980 = vld [vmem:[%s1948 + $0xf8] sm:$0xff]
        %v1981 = vpack.c.bf16 %v1917, %v1916
        %v1982 = vpack.c.bf16 %v1919, %v1918
        %v1983 = vpack.c.bf16 %v1921, %v1920
        %v1984 = vpack.c.bf16 %v1923, %v1922
        %v1985 = vpack.c.bf16 %v1925, %v1924
        %v1986 = vpack.c.bf16 %v1927, %v1926
        %v1987 = vpack.c.bf16 %v1929, %v1928
        %v1988 = vpack.c.bf16 %v1931, %v1930
        %v1989 = vpack.c.bf16 %v1933, %v1932
        %v1990 = vpack.c.bf16 %v1935, %v1934
        %v1991 = vpack.c.bf16 %v1937, %v1936
        %v1992 = vpack.c.bf16 %v1939, %v1938
        %v1993 = vpack.c.bf16 %v1941, %v1940
        %v1994 = vpack.c.bf16 %v1943, %v1942
        %v1995 = vpack.c.bf16 %v1945, %v1944
        %v1996 = vpack.c.bf16 %v1947, %v1946
        %1997 = vset.pattern.permute.xlu0 5
        %1998 = vperm.xlu0 %1997, %v855
        %v1999 = vpop.permute.xlu0 %1998
        %2001 = vset.pattern.permute.xlu0 5
        %2002 = vperm.xlu0 %2001, %v856
        %v2003 = vpop.permute.xlu0 %2002
        %2005 = vset.pattern.permute.xlu0 5
        %2006 = vperm.xlu0 %2005, %v857
        %v2007 = vpop.permute.xlu0 %2006
        %2009 = vset.pattern.permute.xlu0 5
        %2010 = vperm.xlu0 %2009, %v858
        %v2011 = vpop.permute.xlu0 %2010
        %2013 = vset.pattern.permute.xlu0 5
        %2014 = vperm.xlu0 %2013, %v859
        %v2015 = vpop.permute.xlu0 %2014
        %2017 = vset.pattern.permute.xlu0 5
        %2018 = vperm.xlu0 %2017, %v860
        %v2019 = vpop.permute.xlu0 %2018
        %2021 = vset.pattern.permute.xlu0 5
        %2022 = vperm.xlu0 %2021, %v861
        %v2023 = vpop.permute.xlu0 %2022
        %2025 = vset.pattern.permute.xlu0 5
        %2026 = vperm.xlu0 %2025, %v862
        %v2027 = vpop.permute.xlu0 %2026
        %2029 = vset.pattern.permute.xlu0 5
        %2030 = vperm.xlu0 %2029, %v863
        %v2031 = vpop.permute.xlu0 %2030
        %2033 = vset.pattern.permute.xlu0 5
        %2034 = vperm.xlu0 %2033, %v864
        %v2035 = vpop.permute.xlu0 %2034
        %2037 = vset.pattern.permute.xlu0 5
        %2038 = vperm.xlu0 %2037, %v865
        %v2039 = vpop.permute.xlu0 %2038
        %2041 = vset.pattern.permute.xlu0 5
        %2042 = vperm.xlu0 %2041, %v866
        %v2043 = vpop.permute.xlu0 %2042
        %2045 = vset.pattern.permute.xlu0 5
        %2046 = vperm.xlu0 %2045, %v867
        %v2047 = vpop.permute.xlu0 %2046
        %2049 = vset.pattern.permute.xlu0 5
        %2050 = vperm.xlu0 %2049, %v868
        %v2051 = vpop.permute.xlu0 %2050
        %2053 = vset.pattern.permute.xlu0 5
        %2054 = vperm.xlu0 %2053, %v869
        %v2055 = vpop.permute.xlu0 %2054
        %2057 = vset.pattern.permute.xlu0 5
        %2058 = vperm.xlu0 %2057, %v870
        %v2059 = vpop.permute.xlu0 %2058
        %2061 = vset.pattern.permute.xlu0 5
        %2062 = vperm.xlu0 %2061, %v871
        %v2063 = vpop.permute.xlu0 %2062
        %2065 = vset.pattern.permute.xlu0 5
        %2066 = vperm.xlu0 %2065, %v872
        %v2067 = vpop.permute.xlu0 %2066
        %2069 = vset.pattern.permute.xlu0 5
        %2070 = vperm.xlu0 %2069, %v873
        %v2071 = vpop.permute.xlu0 %2070
        %2073 = vset.pattern.permute.xlu0 5
        %2074 = vperm.xlu0 %2073, %v874
        %v2075 = vpop.permute.xlu0 %2074
        %2077 = vset.pattern.permute.xlu0 5
        %2078 = vperm.xlu0 %2077, %v875
        %v2079 = vpop.permute.xlu0 %2078
        %2081 = vset.pattern.permute.xlu0 5
        %2082 = vperm.xlu0 %2081, %v876
        %v2083 = vpop.permute.xlu0 %2082
        %2085 = vset.pattern.permute.xlu0 5
        %2086 = vperm.xlu0 %2085, %v877
        %v2087 = vpop.permute.xlu0 %2086
        %2089 = vset.pattern.permute.xlu0 5
        %2090 = vperm.xlu0 %2089, %v878
        %v2091 = vpop.permute.xlu0 %2090
        %2093 = vset.pattern.permute.xlu0 5
        %2094 = vperm.xlu0 %2093, %v629
        %v2095 = vpop.permute.xlu0 %2094
        %2097 = vset.pattern.permute.xlu0 5
        %2098 = vperm.xlu0 %2097, %v630
        %v2099 = vpop.permute.xlu0 %2098
        %2101 = vset.pattern.permute.xlu0 5
        %2102 = vperm.xlu0 %2101, %v631
        %v2103 = vpop.permute.xlu0 %2102
        %2105 = vset.pattern.permute.xlu0 5
        %2106 = vperm.xlu0 %2105, %v632
        %v2107 = vpop.permute.xlu0 %2106
        %2109 = vset.pattern.permute.xlu0 5
        %2110 = vperm.xlu0 %2109, %v633
        %v2111 = vpop.permute.xlu0 %2110
        %2113 = vset.pattern.permute.xlu0 5
        %2114 = vperm.xlu0 %2113, %v634
        %v2115 = vpop.permute.xlu0 %2114
        %2117 = vset.pattern.permute.xlu0 5
        %2118 = vperm.xlu0 %2117, %v635
        %v2119 = vpop.permute.xlu0 %2118
        %2121 = vset.pattern.permute.xlu0 5
        %2122 = vperm.xlu0 %2121, %v636
        %v2123 = vpop.permute.xlu0 %2122
        %v2157 = vunpack.c.l.b16 %v1949
        %v2158 = vunpack.c.h.b16 %v1949
        %v2159 = vunpack.c.l.b16 %v1950
        %v2160 = vunpack.c.h.b16 %v1950
        %v2161 = vunpack.c.l.b16 %v1951
        %v2162 = vunpack.c.h.b16 %v1951
        %v2163 = vunpack.c.l.b16 %v1952
        %v2164 = vunpack.c.h.b16 %v1952
        %v2165 = vunpack.c.l.b16 %v1953
        %v2166 = vunpack.c.h.b16 %v1953
        %v2167 = vunpack.c.l.b16 %v1954
        %v2168 = vunpack.c.h.b16 %v1954
        %v2169 = vunpack.c.l.b16 %v1955
        %v2170 = vunpack.c.h.b16 %v1955
        %v2171 = vunpack.c.l.b16 %v1956
        %v2172 = vunpack.c.h.b16 %v1956
        %v2173 = vunpack.c.l.b16 %v1957
        %v2174 = vunpack.c.h.b16 %v1957
        %v2175 = vunpack.c.l.b16 %v1958
        %v2176 = vunpack.c.h.b16 %v1958
        %v2177 = vunpack.c.l.b16 %v1959
        %v2178 = vunpack.c.h.b16 %v1959
        %v2179 = vunpack.c.l.b16 %v1960
        %v2180 = vunpack.c.h.b16 %v1960
        %v2181 = vunpack.c.l.b16 %v1961
        %v2182 = vunpack.c.h.b16 %v1961
        %v2183 = vunpack.c.l.b16 %v1962
        %v2184 = vunpack.c.h.b16 %v1962
        %v2185 = vunpack.c.l.b16 %v1963
        %v2186 = vunpack.c.h.b16 %v1963
        %v2187 = vunpack.c.l.b16 %v1964
        %v2188 = vunpack.c.h.b16 %v1964
        %v2189 = vunpack.c.l.b16 %v1965
        %v2190 = vunpack.c.h.b16 %v1965
        %v2191 = vunpack.c.l.b16 %v1966
        %v2192 = vunpack.c.h.b16 %v1966
        %v2193 = vunpack.c.l.b16 %v1967
        %v2194 = vunpack.c.h.b16 %v1967
        %v2195 = vunpack.c.l.b16 %v1968
        %v2196 = vunpack.c.h.b16 %v1968
        %v2197 = vunpack.c.l.b16 %v1969
        %v2198 = vunpack.c.h.b16 %v1969
        %v2199 = vunpack.c.l.b16 %v1970
        %v2200 = vunpack.c.h.b16 %v1970
        %v2201 = vunpack.c.l.b16 %v1971
        %v2202 = vunpack.c.h.b16 %v1971
        %v2203 = vunpack.c.l.b16 %v1972
        %v2204 = vunpack.c.h.b16 %v1972
        %v2205 = vunpack.c.l.b16 %v1973
        %v2206 = vunpack.c.h.b16 %v1973
        %v2207 = vunpack.c.l.b16 %v1974
        %v2208 = vunpack.c.h.b16 %v1974
        %v2209 = vunpack.c.l.b16 %v1975
        %v2210 = vunpack.c.h.b16 %v1975
        %v2211 = vunpack.c.l.b16 %v1976
        %v2212 = vunpack.c.h.b16 %v1976
        %v2213 = vunpack.c.l.b16 %v1977
        %v2214 = vunpack.c.h.b16 %v1977
        %v2215 = vunpack.c.l.b16 %v1978
        %v2216 = vunpack.c.h.b16 %v1978
        %v2217 = vunpack.c.l.b16 %v1979
        %v2218 = vunpack.c.h.b16 %v1979
        %v2219 = vunpack.c.l.b16 %v1980
        %v2220 = vunpack.c.h.b16 %v1980
        %v2221 = vpack.c.b16 %v2159, %v2157
        %v2222 = vpack.c.b16 %v2160, %v2158
        %v2223 = vpack.c.b16 %v2163, %v2161
        %v2224 = vpack.c.b16 %v2164, %v2162
        %v2225 = vpack.c.b16 %v2167, %v2165
        %v2226 = vpack.c.b16 %v2168, %v2166
        %v2227 = vpack.c.b16 %v2171, %v2169
        %v2228 = vpack.c.b16 %v2172, %v2170
        %v2229 = vpack.c.b16 %v2175, %v2173
        %v2230 = vpack.c.b16 %v2176, %v2174
        %v2231 = vpack.c.b16 %v2179, %v2177
        %v2232 = vpack.c.b16 %v2180, %v2178
        %v2233 = vpack.c.b16 %v2183, %v2181
        %v2234 = vpack.c.b16 %v2184, %v2182
        %v2235 = vpack.c.b16 %v2187, %v2185
        %v2236 = vpack.c.b16 %v2188, %v2186
        %v2237 = vpack.c.b16 %v2191, %v2189
        %v2238 = vpack.c.b16 %v2192, %v2190
        %v2239 = vpack.c.b16 %v2195, %v2193
        %v2240 = vpack.c.b16 %v2196, %v2194
        %v2241 = vpack.c.b16 %v2199, %v2197
        %v2242 = vpack.c.b16 %v2200, %v2198
        %v2243 = vpack.c.b16 %v2203, %v2201
        %v2244 = vpack.c.b16 %v2204, %v2202
        %v2245 = vpack.c.b16 %v2207, %v2205
        %v2246 = vpack.c.b16 %v2208, %v2206
        %v2247 = vpack.c.b16 %v2211, %v2209
        %v2248 = vpack.c.b16 %v2212, %v2210
        %v2249 = vpack.c.b16 %v2215, %v2213
        %v2250 = vpack.c.b16 %v2216, %v2214
        %v2251 = vpack.c.b16 %v2219, %v2217
        %v2252 = vpack.c.b16 %v2220, %v2218
        %2285 = vmatpush.bf16.msra.mxu0 %v1988
        %2286 = vmatpush.bf16.msra.mxu0 %v1987
        %2287 = vmatpush.bf16.msra.mxu0 %v1986
        %2288 = vmatpush.bf16.msra.mxu0 %v1985
        %2289 = vmatpush.bf16.msra.mxu0 %v1984
        %2290 = vmatpush.bf16.msra.mxu0 %v1983
        %2291 = vmatpush.bf16.msra.mxu0 %v1982
        %2292 = vmatpush.bf16.msra.mxu0 %v1981
        %2293 = vmatmul.bf16.gmra.mxu0 %v2221
        %v2294 = vpop.f32.mrf.mxu0
        %v2295 = vadd.f32 %v1999, %v2294
        %v2296 = vpop.f32.mrf.mxu0
        %v2297 = vadd.f32 %v2003, %v2296
        %2298 = vmatmul.bf16.gmra.mxu0 %v2223
        %v2299 = vpop.f32.mrf.mxu0
        %v2300 = vadd.f32 %v2007, %v2299
        %v2301 = vpop.f32.mrf.mxu0
        %v2302 = vadd.f32 %v2011, %v2301
        %2303 = vmatmul.bf16.gmra.mxu0 %v2225
        %v2304 = vpop.f32.mrf.mxu0
        %v2305 = vadd.f32 %v2015, %v2304
        %v2306 = vpop.f32.mrf.mxu0
        %v2307 = vadd.f32 %v2019, %v2306
        %2308 = vmatmul.bf16.gmra.mxu0 %v2227
        %v2309 = vpop.f32.mrf.mxu0
        %v2310 = vadd.f32 %v2023, %v2309
        %v2311 = vpop.f32.mrf.mxu0
        %v2312 = vadd.f32 %v2027, %v2311
        %2313 = vmatmul.bf16.gmra.mxu0 %v2229
        %v2314 = vpop.f32.mrf.mxu0
        %v2315 = vadd.f32 %v2031, %v2314
        %v2316 = vpop.f32.mrf.mxu0
        %v2317 = vadd.f32 %v2035, %v2316
        %2318 = vmatmul.bf16.gmra.mxu0 %v2231
        %v2319 = vpop.f32.mrf.mxu0
        %v2320 = vadd.f32 %v2039, %v2319
        %v2321 = vpop.f32.mrf.mxu0
        %v2322 = vadd.f32 %v2043, %v2321
        %2323 = vmatmul.bf16.gmra.mxu0 %v2233
        %v2324 = vpop.f32.mrf.mxu0
        %v2325 = vadd.f32 %v2047, %v2324
        %v2326 = vpop.f32.mrf.mxu0
        %v2327 = vadd.f32 %v2051, %v2326
        %2328 = vmatmul.bf16.gmra.mxu0 %v2235
        %v2329 = vpop.f32.mrf.mxu0
        %v2330 = vadd.f32 %v2055, %v2329
        %v2331 = vpop.f32.mrf.mxu0
        %v2332 = vadd.f32 %v2059, %v2331
        %2333 = vmatmul.bf16.gmra.mxu0 %v2237
        %v2334 = vpop.f32.mrf.mxu0
        %v2335 = vadd.f32 %v2063, %v2334
        %v2336 = vpop.f32.mrf.mxu0
        %v2337 = vadd.f32 %v2067, %v2336
        %2338 = vmatmul.bf16.gmra.mxu0 %v2239
        %v2339 = vpop.f32.mrf.mxu0
        %v2340 = vadd.f32 %v2071, %v2339
        %v2341 = vpop.f32.mrf.mxu0
        %v2342 = vadd.f32 %v2075, %v2341
        %2343 = vmatmul.bf16.gmra.mxu0 %v2241
        %v2344 = vpop.f32.mrf.mxu0
        %v2345 = vadd.f32 %v2079, %v2344
        %v2346 = vpop.f32.mrf.mxu0
        %v2347 = vadd.f32 %v2083, %v2346
        %2348 = vmatmul.bf16.gmra.mxu0 %v2243
        %v2349 = vpop.f32.mrf.mxu0
        %v2350 = vadd.f32 %v2087, %v2349
        %v2351 = vpop.f32.mrf.mxu0
        %v2352 = vadd.f32 %v2091, %v2351
        %2353 = vmatmul.bf16.gmra.mxu0 %v2245
        %v2354 = vpop.f32.mrf.mxu0
        %v2355 = vadd.f32 %v2095, %v2354
        %v2356 = vpop.f32.mrf.mxu0
        %v2357 = vadd.f32 %v2099, %v2356
        %2358 = vmatmul.bf16.gmra.mxu0 %v2247
        %v2359 = vpop.f32.mrf.mxu0
        %v2360 = vadd.f32 %v2103, %v2359
        %v2361 = vpop.f32.mrf.mxu0
        %v2362 = vadd.f32 %v2107, %v2361
        %2363 = vmatmul.bf16.gmra.mxu0 %v2249
        %v2364 = vpop.f32.mrf.mxu0
        %v2365 = vadd.f32 %v2111, %v2364
        %v2366 = vpop.f32.mrf.mxu0
        %v2367 = vadd.f32 %v2115, %v2366
        %2368 = vmatmul.bf16.gmra.mxu0 %v2251
        %v2369 = vpop.f32.mrf.mxu0
        %v2370 = vadd.f32 %v2119, %v2369
        %v2371 = vpop.f32.mrf.mxu0
        %v2372 = vadd.f32 %v2123, %v2371
        %2373 = vdwg.mxu0
        %2374 = vmatpush.bf16.msra.mxu0 %v1996
        %2375 = vmatpush.bf16.msra.mxu0 %v1995
        %2376 = vmatpush.bf16.msra.mxu0 %v1994
        %2377 = vmatpush.bf16.msra.mxu0 %v1993
        %2378 = vmatpush.bf16.msra.mxu0 %v1992
        %2379 = vmatpush.bf16.msra.mxu0 %v1991
        %2380 = vmatpush.bf16.msra.mxu0 %v1990
        %2381 = vmatpush.bf16.msra.mxu0 %v1989
        %2382 = vmatmul.bf16.gmra.mxu0 %v2222
        %v2383 = vpop.f32.mrf.mxu0
        %v2384 = vadd.f32 %v2295, %v2383
        %v2385 = vpop.f32.mrf.mxu0
        %v2386 = vadd.f32 %v2297, %v2385
        %2387 = vmatmul.bf16.gmra.mxu0 %v2224
        %v2388 = vpop.f32.mrf.mxu0
        %v2389 = vadd.f32 %v2300, %v2388
        %v2390 = vpop.f32.mrf.mxu0
        %v2391 = vadd.f32 %v2302, %v2390
        %2392 = vmatmul.bf16.gmra.mxu0 %v2226
        %v2393 = vpop.f32.mrf.mxu0
        %v2394 = vadd.f32 %v2305, %v2393
        %v2395 = vpop.f32.mrf.mxu0
        %v2396 = vadd.f32 %v2307, %v2395
        %2397 = vmatmul.bf16.gmra.mxu0 %v2228
        %v2398 = vpop.f32.mrf.mxu0
        %v2399 = vadd.f32 %v2310, %v2398
        %v2400 = vpop.f32.mrf.mxu0
        %v2401 = vadd.f32 %v2312, %v2400
        %2402 = vmatmul.bf16.gmra.mxu0 %v2230
        %v2403 = vpop.f32.mrf.mxu0
        %v2404 = vadd.f32 %v2315, %v2403
        %v2405 = vpop.f32.mrf.mxu0
        %v2406 = vadd.f32 %v2317, %v2405
        %2407 = vmatmul.bf16.gmra.mxu0 %v2232
        %v2408 = vpop.f32.mrf.mxu0
        %v2409 = vadd.f32 %v2320, %v2408
        %v2410 = vpop.f32.mrf.mxu0
        %v2411 = vadd.f32 %v2322, %v2410
        %2412 = vmatmul.bf16.gmra.mxu0 %v2234
        %v2413 = vpop.f32.mrf.mxu0
        %v2414 = vadd.f32 %v2325, %v2413
        %v2415 = vpop.f32.mrf.mxu0
        %v2416 = vadd.f32 %v2327, %v2415
        %2417 = vmatmul.bf16.gmra.mxu0 %v2236
        %v2418 = vpop.f32.mrf.mxu0
        %v2419 = vadd.f32 %v2330, %v2418
        %v2420 = vpop.f32.mrf.mxu0
        %v2421 = vadd.f32 %v2332, %v2420
        %2422 = vmatmul.bf16.gmra.mxu0 %v2238
        %v2423 = vpop.f32.mrf.mxu0
        %v2424 = vadd.f32 %v2335, %v2423
        %v2425 = vpop.f32.mrf.mxu0
        %v2426 = vadd.f32 %v2337, %v2425
        %2427 = vmatmul.bf16.gmra.mxu0 %v2240
        %v2428 = vpop.f32.mrf.mxu0
        %v2429 = vadd.f32 %v2340, %v2428
        %v2430 = vpop.f32.mrf.mxu0
        %v2431 = vadd.f32 %v2342, %v2430
        %2432 = vmatmul.bf16.gmra.mxu0 %v2242
        %v2433 = vpop.f32.mrf.mxu0
        %v2434 = vadd.f32 %v2345, %v2433
        %v2435 = vpop.f32.mrf.mxu0
        %v2436 = vadd.f32 %v2347, %v2435
        %2437 = vmatmul.bf16.gmra.mxu0 %v2244
        %v2438 = vpop.f32.mrf.mxu0
        %v2439 = vadd.f32 %v2350, %v2438
        %v2440 = vpop.f32.mrf.mxu0
        %v2441 = vadd.f32 %v2352, %v2440
        %2442 = vmatmul.bf16.gmra.mxu0 %v2246
        %v2443 = vpop.f32.mrf.mxu0
        %v2444 = vadd.f32 %v2355, %v2443
        %v2445 = vpop.f32.mrf.mxu0
        %v2446 = vadd.f32 %v2357, %v2445
        %2447 = vmatmul.bf16.gmra.mxu0 %v2248
        %v2448 = vpop.f32.mrf.mxu0
        %v2449 = vadd.f32 %v2360, %v2448
        %v2450 = vpop.f32.mrf.mxu0
        %v2451 = vadd.f32 %v2362, %v2450
        %2452 = vmatmul.bf16.gmra.mxu0 %v2250
        %v2453 = vpop.f32.mrf.mxu0
        %v2454 = vadd.f32 %v2365, %v2453
        %v2455 = vpop.f32.mrf.mxu0
        %v2456 = vadd.f32 %v2367, %v2455
        %2457 = vmatmul.bf16.gmra.mxu0 %v2252
        %v2458 = vpop.f32.mrf.mxu0
        %v2459 = vadd.f32 %v2370, %v2458
        %v2460 = vpop.f32.mrf.mxu0
        %v2461 = vadd.f32 %v2372, %v2460
        %2462 = vdwg.mxu0
        %v2463 = vmax.f32 %v2384, 0.0
        %v2464 = vmax.f32 %v2386, 0.0
        %v2465 = vmax.f32 %v2389, 0.0
        %v2466 = vmax.f32 %v2391, 0.0
        %v2467 = vmax.f32 %v2394, 0.0
        %v2468 = vmax.f32 %v2396, 0.0
        %v2469 = vmax.f32 %v2399, 0.0
        %v2470 = vmax.f32 %v2401, 0.0
        %v2471 = vmax.f32 %v2404, 0.0
        %v2472 = vmax.f32 %v2406, 0.0
        %v2473 = vmax.f32 %v2409, 0.0
        %v2474 = vmax.f32 %v2411, 0.0
        %v2475 = vmax.f32 %v2414, 0.0
        %v2476 = vmax.f32 %v2416, 0.0
        %v2477 = vmax.f32 %v2419, 0.0
        %v2478 = vmax.f32 %v2421, 0.0
        %v2479 = vmax.f32 %v2424, 0.0
        %v2480 = vmax.f32 %v2426, 0.0
        %v2481 = vmax.f32 %v2429, 0.0
        %v2482 = vmax.f32 %v2431, 0.0
        %v2483 = vmax.f32 %v2434, 0.0
        %v2484 = vmax.f32 %v2436, 0.0
        %v2485 = vmax.f32 %v2439, 0.0
        %v2486 = vmax.f32 %v2441, 0.0
        %v2487 = vmax.f32 %v2444, 0.0
        %v2488 = vmax.f32 %v2446, 0.0
        %v2489 = vmax.f32 %v2449, 0.0
        %v2490 = vmax.f32 %v2451, 0.0
        %v2491 = vmax.f32 %v2454, 0.0
        %v2492 = vmax.f32 %v2456, 0.0
        %v2493 = vmax.f32 %v2459, 0.0
        %v2494 = vmax.f32 %v2461, 0.0
        %s2495 = scalar_lea.vmem [#allocation2], 768
        %v2496 = vld [vmem:[%s2495] sm:$0xff]
        %v2497 = vld [vmem:[%s2495 + $0x8] sm:$0xff]
        %v2498 = vld [vmem:[%s2495 + $0x10] sm:$0xff]
        %v2499 = vld [vmem:[%s2495 + $0x18] sm:$0xff]
        %v2500 = vld [vmem:[%s2495 + $0x20] sm:$0xff]
        %v2501 = vld [vmem:[%s2495 + $0x28] sm:$0xff]
        %v2502 = vld [vmem:[%s2495 + $0x30] sm:$0xff]
        %v2503 = vld [vmem:[%s2495 + $0x38] sm:$0xff]
        %v2504 = vld [vmem:[%s2495 + $0x40] sm:$0xff]
        %v2505 = vld [vmem:[%s2495 + $0x48] sm:$0xff]
        %v2506 = vld [vmem:[%s2495 + $0x50] sm:$0xff]
        %v2507 = vld [vmem:[%s2495 + $0x58] sm:$0xff]
        %v2508 = vld [vmem:[%s2495 + $0x60] sm:$0xff]
        %v2509 = vld [vmem:[%s2495 + $0x68] sm:$0xff]
        %v2510 = vld [vmem:[%s2495 + $0x70] sm:$0xff]
        %v2511 = vld [vmem:[%s2495 + $0x78] sm:$0xff]
        %v2512 = vld [vmem:[%s2495 + $0x80] sm:$0xff]
        %v2513 = vld [vmem:[%s2495 + $0x88] sm:$0xff]
        %v2514 = vld [vmem:[%s2495 + $0x90] sm:$0xff]
        %v2515 = vld [vmem:[%s2495 + $0x98] sm:$0xff]
        %v2516 = vld [vmem:[%s2495 + $0xa0] sm:$0xff]
        %v2517 = vld [vmem:[%s2495 + $0xa8] sm:$0xff]
        %v2518 = vld [vmem:[%s2495 + $0xb0] sm:$0xff]
        %v2519 = vld [vmem:[%s2495 + $0xb8] sm:$0xff]
        %v2520 = vld [vmem:[%s2495 + $0xc0] sm:$0xff]
        %v2521 = vld [vmem:[%s2495 + $0xc8] sm:$0xff]
        %v2522 = vld [vmem:[%s2495 + $0xd0] sm:$0xff]
        %v2523 = vld [vmem:[%s2495 + $0xd8] sm:$0xff]
        %v2524 = vld [vmem:[%s2495 + $0xe0] sm:$0xff]
        %v2525 = vld [vmem:[%s2495 + $0xe8] sm:$0xff]
        %v2526 = vld [vmem:[%s2495 + $0xf0] sm:$0xff]
        %v2527 = vld [vmem:[%s2495 + $0xf8] sm:$0xff]
        %v2528 = vpack.c.bf16 %v2464, %v2463
        %v2529 = vpack.c.bf16 %v2466, %v2465
        %v2530 = vpack.c.bf16 %v2468, %v2467
        %v2531 = vpack.c.bf16 %v2470, %v2469
        %v2532 = vpack.c.bf16 %v2472, %v2471
        %v2533 = vpack.c.bf16 %v2474, %v2473
        %v2534 = vpack.c.bf16 %v2476, %v2475
        %v2535 = vpack.c.bf16 %v2478, %v2477
        %v2536 = vpack.c.bf16 %v2480, %v2479
        %v2537 = vpack.c.bf16 %v2482, %v2481
        %v2538 = vpack.c.bf16 %v2484, %v2483
        %v2539 = vpack.c.bf16 %v2486, %v2485
        %v2540 = vpack.c.bf16 %v2488, %v2487
        %v2541 = vpack.c.bf16 %v2490, %v2489
        %v2542 = vpack.c.bf16 %v2492, %v2491
        %v2543 = vpack.c.bf16 %v2494, %v2493
        %2544 = vset.pattern.permute.xlu0 6
        %2545 = vperm.xlu0 %2544, %v855
        %v2546 = vpop.permute.xlu0 %2545
        %2548 = vset.pattern.permute.xlu0 6
        %2549 = vperm.xlu0 %2548, %v856
        %v2550 = vpop.permute.xlu0 %2549
        %2552 = vset.pattern.permute.xlu0 6
        %2553 = vperm.xlu0 %2552, %v857
        %v2554 = vpop.permute.xlu0 %2553
        %2556 = vset.pattern.permute.xlu0 6
        %2557 = vperm.xlu0 %2556, %v858
        %v2558 = vpop.permute.xlu0 %2557
        %2560 = vset.pattern.permute.xlu0 6
        %2561 = vperm.xlu0 %2560, %v859
        %v2562 = vpop.permute.xlu0 %2561
        %2564 = vset.pattern.permute.xlu0 6
        %2565 = vperm.xlu0 %2564, %v860
        %v2566 = vpop.permute.xlu0 %2565
        %2568 = vset.pattern.permute.xlu0 6
        %2569 = vperm.xlu0 %2568, %v861
        %v2570 = vpop.permute.xlu0 %2569
        %2572 = vset.pattern.permute.xlu0 6
        %2573 = vperm.xlu0 %2572, %v862
        %v2574 = vpop.permute.xlu0 %2573
        %2576 = vset.pattern.permute.xlu0 6
        %2577 = vperm.xlu0 %2576, %v863
        %v2578 = vpop.permute.xlu0 %2577
        %2580 = vset.pattern.permute.xlu0 6
        %2581 = vperm.xlu0 %2580, %v864
        %v2582 = vpop.permute.xlu0 %2581
        %2584 = vset.pattern.permute.xlu0 6
        %2585 = vperm.xlu0 %2584, %v865
        %v2586 = vpop.permute.xlu0 %2585
        %2588 = vset.pattern.permute.xlu0 6
        %2589 = vperm.xlu0 %2588, %v866
        %v2590 = vpop.permute.xlu0 %2589
        %2592 = vset.pattern.permute.xlu0 6
        %2593 = vperm.xlu0 %2592, %v867
        %v2594 = vpop.permute.xlu0 %2593
        %2596 = vset.pattern.permute.xlu0 6
        %2597 = vperm.xlu0 %2596, %v868
        %v2598 = vpop.permute.xlu0 %2597
        %2600 = vset.pattern.permute.xlu0 6
        %2601 = vperm.xlu0 %2600, %v869
        %v2602 = vpop.permute.xlu0 %2601
        %2604 = vset.pattern.permute.xlu0 6
        %2605 = vperm.xlu0 %2604, %v870
        %v2606 = vpop.permute.xlu0 %2605
        %2608 = vset.pattern.permute.xlu0 6
        %2609 = vperm.xlu0 %2608, %v871
        %v2610 = vpop.permute.xlu0 %2609
        %2612 = vset.pattern.permute.xlu0 6
        %2613 = vperm.xlu0 %2612, %v872
        %v2614 = vpop.permute.xlu0 %2613
        %2616 = vset.pattern.permute.xlu0 6
        %2617 = vperm.xlu0 %2616, %v873
        %v2618 = vpop.permute.xlu0 %2617
        %2620 = vset.pattern.permute.xlu0 6
        %2621 = vperm.xlu0 %2620, %v874
        %v2622 = vpop.permute.xlu0 %2621
        %2624 = vset.pattern.permute.xlu0 6
        %2625 = vperm.xlu0 %2624, %v875
        %v2626 = vpop.permute.xlu0 %2625
        %2628 = vset.pattern.permute.xlu0 6
        %2629 = vperm.xlu0 %2628, %v876
        %v2630 = vpop.permute.xlu0 %2629
        %2632 = vset.pattern.permute.xlu0 6
        %2633 = vperm.xlu0 %2632, %v877
        %v2634 = vpop.permute.xlu0 %2633
        %2636 = vset.pattern.permute.xlu0 6
        %2637 = vperm.xlu0 %2636, %v878
        %v2638 = vpop.permute.xlu0 %2637
        %2640 = vset.pattern.permute.xlu0 6
        %2641 = vperm.xlu0 %2640, %v629
        %v2642 = vpop.permute.xlu0 %2641
        %2644 = vset.pattern.permute.xlu0 6
        %2645 = vperm.xlu0 %2644, %v630
        %v2646 = vpop.permute.xlu0 %2645
        %2648 = vset.pattern.permute.xlu0 6
        %2649 = vperm.xlu0 %2648, %v631
        %v2650 = vpop.permute.xlu0 %2649
        %2652 = vset.pattern.permute.xlu0 6
        %2653 = vperm.xlu0 %2652, %v632
        %v2654 = vpop.permute.xlu0 %2653
        %2656 = vset.pattern.permute.xlu0 6
        %2657 = vperm.xlu0 %2656, %v633
        %v2658 = vpop.permute.xlu0 %2657
        %2660 = vset.pattern.permute.xlu0 6
        %2661 = vperm.xlu0 %2660, %v634
        %v2662 = vpop.permute.xlu0 %2661
        %2664 = vset.pattern.permute.xlu0 6
        %2665 = vperm.xlu0 %2664, %v635
        %v2666 = vpop.permute.xlu0 %2665
        %2668 = vset.pattern.permute.xlu0 6
        %2669 = vperm.xlu0 %2668, %v636
        %v2670 = vpop.permute.xlu0 %2669
        %v2704 = vunpack.c.l.b16 %v2496
        %v2705 = vunpack.c.h.b16 %v2496
        %v2706 = vunpack.c.l.b16 %v2497
        %v2707 = vunpack.c.h.b16 %v2497
        %v2708 = vunpack.c.l.b16 %v2498
        %v2709 = vunpack.c.h.b16 %v2498
        %v2710 = vunpack.c.l.b16 %v2499
        %v2711 = vunpack.c.h.b16 %v2499
        %v2712 = vunpack.c.l.b16 %v2500
        %v2713 = vunpack.c.h.b16 %v2500
        %v2714 = vunpack.c.l.b16 %v2501
        %v2715 = vunpack.c.h.b16 %v2501
        %v2716 = vunpack.c.l.b16 %v2502
        %v2717 = vunpack.c.h.b16 %v2502
        %v2718 = vunpack.c.l.b16 %v2503
        %v2719 = vunpack.c.h.b16 %v2503
        %v2720 = vunpack.c.l.b16 %v2504
        %v2721 = vunpack.c.h.b16 %v2504
        %v2722 = vunpack.c.l.b16 %v2505
        %v2723 = vunpack.c.h.b16 %v2505
        %v2724 = vunpack.c.l.b16 %v2506
        %v2725 = vunpack.c.h.b16 %v2506
        %v2726 = vunpack.c.l.b16 %v2507
        %v2727 = vunpack.c.h.b16 %v2507
        %v2728 = vunpack.c.l.b16 %v2508
        %v2729 = vunpack.c.h.b16 %v2508
        %v2730 = vunpack.c.l.b16 %v2509
        %v2731 = vunpack.c.h.b16 %v2509
        %v2732 = vunpack.c.l.b16 %v2510
        %v2733 = vunpack.c.h.b16 %v2510
        %v2734 = vunpack.c.l.b16 %v2511
        %v2735 = vunpack.c.h.b16 %v2511
        %v2736 = vunpack.c.l.b16 %v2512
        %v2737 = vunpack.c.h.b16 %v2512
        %v2738 = vunpack.c.l.b16 %v2513
        %v2739 = vunpack.c.h.b16 %v2513
        %v2740 = vunpack.c.l.b16 %v2514
        %v2741 = vunpack.c.h.b16 %v2514
        %v2742 = vunpack.c.l.b16 %v2515
        %v2743 = vunpack.c.h.b16 %v2515
        %v2744 = vunpack.c.l.b16 %v2516
        %v2745 = vunpack.c.h.b16 %v2516
        %v2746 = vunpack.c.l.b16 %v2517
        %v2747 = vunpack.c.h.b16 %v2517
        %v2748 = vunpack.c.l.b16 %v2518
        %v2749 = vunpack.c.h.b16 %v2518
        %v2750 = vunpack.c.l.b16 %v2519
        %v2751 = vunpack.c.h.b16 %v2519
        %v2752 = vunpack.c.l.b16 %v2520
        %v2753 = vunpack.c.h.b16 %v2520
        %v2754 = vunpack.c.l.b16 %v2521
        %v2755 = vunpack.c.h.b16 %v2521
        %v2756 = vunpack.c.l.b16 %v2522
        %v2757 = vunpack.c.h.b16 %v2522
        %v2758 = vunpack.c.l.b16 %v2523
        %v2759 = vunpack.c.h.b16 %v2523
        %v2760 = vunpack.c.l.b16 %v2524
        %v2761 = vunpack.c.h.b16 %v2524
        %v2762 = vunpack.c.l.b16 %v2525
        %v2763 = vunpack.c.h.b16 %v2525
        %v2764 = vunpack.c.l.b16 %v2526
        %v2765 = vunpack.c.h.b16 %v2526
        %v2766 = vunpack.c.l.b16 %v2527
        %v2767 = vunpack.c.h.b16 %v2527
        %v2768 = vpack.c.b16 %v2706, %v2704
        %v2769 = vpack.c.b16 %v2707, %v2705
        %v2770 = vpack.c.b16 %v2710, %v2708
        %v2771 = vpack.c.b16 %v2711, %v2709
        %v2772 = vpack.c.b16 %v2714, %v2712
        %v2773 = vpack.c.b16 %v2715, %v2713
        %v2774 = vpack.c.b16 %v2718, %v2716
        %v2775 = vpack.c.b16 %v2719, %v2717
        %v2776 = vpack.c.b16 %v2722, %v2720
        %v2777 = vpack.c.b16 %v2723, %v2721
        %v2778 = vpack.c.b16 %v2726, %v2724
        %v2779 = vpack.c.b16 %v2727, %v2725
        %v2780 = vpack.c.b16 %v2730, %v2728
        %v2781 = vpack.c.b16 %v2731, %v2729
        %v2782 = vpack.c.b16 %v2734, %v2732
        %v2783 = vpack.c.b16 %v2735, %v2733
        %v2784 = vpack.c.b16 %v2738, %v2736
        %v2785 = vpack.c.b16 %v2739, %v2737
        %v2786 = vpack.c.b16 %v2742, %v2740
        %v2787 = vpack.c.b16 %v2743, %v2741
        %v2788 = vpack.c.b16 %v2746, %v2744
        %v2789 = vpack.c.b16 %v2747, %v2745
        %v2790 = vpack.c.b16 %v2750, %v2748
        %v2791 = vpack.c.b16 %v2751, %v2749
        %v2792 = vpack.c.b16 %v2754, %v2752
        %v2793 = vpack.c.b16 %v2755, %v2753
        %v2794 = vpack.c.b16 %v2758, %v2756
        %v2795 = vpack.c.b16 %v2759, %v2757
        %v2796 = vpack.c.b16 %v2762, %v2760
        %v2797 = vpack.c.b16 %v2763, %v2761
        %v2798 = vpack.c.b16 %v2766, %v2764
        %v2799 = vpack.c.b16 %v2767, %v2765
        %2832 = vmatpush.bf16.msra.mxu0 %v2535
        %2833 = vmatpush.bf16.msra.mxu0 %v2534
        %2834 = vmatpush.bf16.msra.mxu0 %v2533
        %2835 = vmatpush.bf16.msra.mxu0 %v2532
        %2836 = vmatpush.bf16.msra.mxu0 %v2531
        %2837 = vmatpush.bf16.msra.mxu0 %v2530
        %2838 = vmatpush.bf16.msra.mxu0 %v2529
        %2839 = vmatpush.bf16.msra.mxu0 %v2528
        %2840 = vmatmul.bf16.gmra.mxu0 %v2768
        %v2841 = vpop.f32.mrf.mxu0
        %v2842 = vadd.f32 %v2546, %v2841
        %v2843 = vpop.f32.mrf.mxu0
        %v2844 = vadd.f32 %v2550, %v2843
        %2845 = vmatmul.bf16.gmra.mxu0 %v2770
        %v2846 = vpop.f32.mrf.mxu0
        %v2847 = vadd.f32 %v2554, %v2846
        %v2848 = vpop.f32.mrf.mxu0
        %v2849 = vadd.f32 %v2558, %v2848
        %2850 = vmatmul.bf16.gmra.mxu0 %v2772
        %v2851 = vpop.f32.mrf.mxu0
        %v2852 = vadd.f32 %v2562, %v2851
        %v2853 = vpop.f32.mrf.mxu0
        %v2854 = vadd.f32 %v2566, %v2853
        %2855 = vmatmul.bf16.gmra.mxu0 %v2774
        %v2856 = vpop.f32.mrf.mxu0
        %v2857 = vadd.f32 %v2570, %v2856
        %v2858 = vpop.f32.mrf.mxu0
        %v2859 = vadd.f32 %v2574, %v2858
        %2860 = vmatmul.bf16.gmra.mxu0 %v2776
        %v2861 = vpop.f32.mrf.mxu0
        %v2862 = vadd.f32 %v2578, %v2861
        %v2863 = vpop.f32.mrf.mxu0
        %v2864 = vadd.f32 %v2582, %v2863
        %2865 = vmatmul.bf16.gmra.mxu0 %v2778
        %v2866 = vpop.f32.mrf.mxu0
        %v2867 = vadd.f32 %v2586, %v2866
        %v2868 = vpop.f32.mrf.mxu0
        %v2869 = vadd.f32 %v2590, %v2868
        %2870 = vmatmul.bf16.gmra.mxu0 %v2780
        %v2871 = vpop.f32.mrf.mxu0
        %v2872 = vadd.f32 %v2594, %v2871
        %v2873 = vpop.f32.mrf.mxu0
        %v2874 = vadd.f32 %v2598, %v2873
        %2875 = vmatmul.bf16.gmra.mxu0 %v2782
        %v2876 = vpop.f32.mrf.mxu0
        %v2877 = vadd.f32 %v2602, %v2876
        %v2878 = vpop.f32.mrf.mxu0
        %v2879 = vadd.f32 %v2606, %v2878
        %2880 = vmatmul.bf16.gmra.mxu0 %v2784
        %v2881 = vpop.f32.mrf.mxu0
        %v2882 = vadd.f32 %v2610, %v2881
        %v2883 = vpop.f32.mrf.mxu0
        %v2884 = vadd.f32 %v2614, %v2883
        %2885 = vmatmul.bf16.gmra.mxu0 %v2786
        %v2886 = vpop.f32.mrf.mxu0
        %v2887 = vadd.f32 %v2618, %v2886
        %v2888 = vpop.f32.mrf.mxu0
        %v2889 = vadd.f32 %v2622, %v2888
        %2890 = vmatmul.bf16.gmra.mxu0 %v2788
        %v2891 = vpop.f32.mrf.mxu0
        %v2892 = vadd.f32 %v2626, %v2891
        %v2893 = vpop.f32.mrf.mxu0
        %v2894 = vadd.f32 %v2630, %v2893
        %2895 = vmatmul.bf16.gmra.mxu0 %v2790
        %v2896 = vpop.f32.mrf.mxu0
        %v2897 = vadd.f32 %v2634, %v2896
        %v2898 = vpop.f32.mrf.mxu0
        %v2899 = vadd.f32 %v2638, %v2898
        %2900 = vmatmul.bf16.gmra.mxu0 %v2792
        %v2901 = vpop.f32.mrf.mxu0
        %v2902 = vadd.f32 %v2642, %v2901
        %v2903 = vpop.f32.mrf.mxu0
        %v2904 = vadd.f32 %v2646, %v2903
        %2905 = vmatmul.bf16.gmra.mxu0 %v2794
        %v2906 = vpop.f32.mrf.mxu0
        %v2907 = vadd.f32 %v2650, %v2906
        %v2908 = vpop.f32.mrf.mxu0
        %v2909 = vadd.f32 %v2654, %v2908
        %2910 = vmatmul.bf16.gmra.mxu0 %v2796
        %v2911 = vpop.f32.mrf.mxu0
        %v2912 = vadd.f32 %v2658, %v2911
        %v2913 = vpop.f32.mrf.mxu0
        %v2914 = vadd.f32 %v2662, %v2913
        %2915 = vmatmul.bf16.gmra.mxu0 %v2798
        %v2916 = vpop.f32.mrf.mxu0
        %v2917 = vadd.f32 %v2666, %v2916
        %v2918 = vpop.f32.mrf.mxu0
        %v2919 = vadd.f32 %v2670, %v2918
        %2920 = vdwg.mxu0
        %2921 = vmatpush.bf16.msra.mxu0 %v2543
        %2922 = vmatpush.bf16.msra.mxu0 %v2542
        %2923 = vmatpush.bf16.msra.mxu0 %v2541
        %2924 = vmatpush.bf16.msra.mxu0 %v2540
        %2925 = vmatpush.bf16.msra.mxu0 %v2539
        %2926 = vmatpush.bf16.msra.mxu0 %v2538
        %2927 = vmatpush.bf16.msra.mxu0 %v2537
        %2928 = vmatpush.bf16.msra.mxu0 %v2536
        %2929 = vmatmul.bf16.gmra.mxu0 %v2769
        %v2930 = vpop.f32.mrf.mxu0
        %v2931 = vadd.f32 %v2842, %v2930
        %v2932 = vpop.f32.mrf.mxu0
        %v2933 = vadd.f32 %v2844, %v2932
        %2934 = vmatmul.bf16.gmra.mxu0 %v2771
        %v2935 = vpop.f32.mrf.mxu0
        %v2936 = vadd.f32 %v2847, %v2935
        %v2937 = vpop.f32.mrf.mxu0
        %v2938 = vadd.f32 %v2849, %v2937
        %2939 = vmatmul.bf16.gmra.mxu0 %v2773
        %v2940 = vpop.f32.mrf.mxu0
        %v2941 = vadd.f32 %v2852, %v2940
        %v2942 = vpop.f32.mrf.mxu0
        %v2943 = vadd.f32 %v2854, %v2942
        %2944 = vmatmul.bf16.gmra.mxu0 %v2775
        %v2945 = vpop.f32.mrf.mxu0
        %v2946 = vadd.f32 %v2857, %v2945
        %v2947 = vpop.f32.mrf.mxu0
        %v2948 = vadd.f32 %v2859, %v2947
        %2949 = vmatmul.bf16.gmra.mxu0 %v2777
        %v2950 = vpop.f32.mrf.mxu0
        %v2951 = vadd.f32 %v2862, %v2950
        %v2952 = vpop.f32.mrf.mxu0
        %v2953 = vadd.f32 %v2864, %v2952
        %2954 = vmatmul.bf16.gmra.mxu0 %v2779
        %v2955 = vpop.f32.mrf.mxu0
        %v2956 = vadd.f32 %v2867, %v2955
        %v2957 = vpop.f32.mrf.mxu0
        %v2958 = vadd.f32 %v2869, %v2957
        %2959 = vmatmul.bf16.gmra.mxu0 %v2781
        %v2960 = vpop.f32.mrf.mxu0
        %v2961 = vadd.f32 %v2872, %v2960
        %v2962 = vpop.f32.mrf.mxu0
        %v2963 = vadd.f32 %v2874, %v2962
        %2964 = vmatmul.bf16.gmra.mxu0 %v2783
        %v2965 = vpop.f32.mrf.mxu0
        %v2966 = vadd.f32 %v2877, %v2965
        %v2967 = vpop.f32.mrf.mxu0
        %v2968 = vadd.f32 %v2879, %v2967
        %2969 = vmatmul.bf16.gmra.mxu0 %v2785
        %v2970 = vpop.f32.mrf.mxu0
        %v2971 = vadd.f32 %v2882, %v2970
        %v2972 = vpop.f32.mrf.mxu0
        %v2973 = vadd.f32 %v2884, %v2972
        %2974 = vmatmul.bf16.gmra.mxu0 %v2787
        %v2975 = vpop.f32.mrf.mxu0
        %v2976 = vadd.f32 %v2887, %v2975
        %v2977 = vpop.f32.mrf.mxu0
        %v2978 = vadd.f32 %v2889, %v2977
        %2979 = vmatmul.bf16.gmra.mxu0 %v2789
        %v2980 = vpop.f32.mrf.mxu0
        %v2981 = vadd.f32 %v2892, %v2980
        %v2982 = vpop.f32.mrf.mxu0
        %v2983 = vadd.f32 %v2894, %v2982
        %2984 = vmatmul.bf16.gmra.mxu0 %v2791
        %v2985 = vpop.f32.mrf.mxu0
        %v2986 = vadd.f32 %v2897, %v2985
        %v2987 = vpop.f32.mrf.mxu0
        %v2988 = vadd.f32 %v2899, %v2987
        %2989 = vmatmul.bf16.gmra.mxu0 %v2793
        %v2990 = vpop.f32.mrf.mxu0
        %v2991 = vadd.f32 %v2902, %v2990
        %v2992 = vpop.f32.mrf.mxu0
        %v2993 = vadd.f32 %v2904, %v2992
        %2994 = vmatmul.bf16.gmra.mxu0 %v2795
        %v2995 = vpop.f32.mrf.mxu0
        %v2996 = vadd.f32 %v2907, %v2995
        %v2997 = vpop.f32.mrf.mxu0
        %v2998 = vadd.f32 %v2909, %v2997
        %2999 = vmatmul.bf16.gmra.mxu0 %v2797
        %v3000 = vpop.f32.mrf.mxu0
        %v3001 = vadd.f32 %v2912, %v3000
        %v3002 = vpop.f32.mrf.mxu0
        %v3003 = vadd.f32 %v2914, %v3002
        %3004 = vmatmul.bf16.gmra.mxu0 %v2799
        %v3005 = vpop.f32.mrf.mxu0
        %v3006 = vadd.f32 %v2917, %v3005
        %v3007 = vpop.f32.mrf.mxu0
        %v3008 = vadd.f32 %v2919, %v3007
        %3009 = vdwg.mxu0
        %v3010 = vmax.f32 %v2931, 0.0
        %v3011 = vmax.f32 %v2933, 0.0
        %v3012 = vmax.f32 %v2936, 0.0
        %v3013 = vmax.f32 %v2938, 0.0
        %v3014 = vmax.f32 %v2941, 0.0
        %v3015 = vmax.f32 %v2943, 0.0
        %v3016 = vmax.f32 %v2946, 0.0
        %v3017 = vmax.f32 %v2948, 0.0
        %v3018 = vmax.f32 %v2951, 0.0
        %v3019 = vmax.f32 %v2953, 0.0
        %v3020 = vmax.f32 %v2956, 0.0
        %v3021 = vmax.f32 %v2958, 0.0
        %v3022 = vmax.f32 %v2961, 0.0
        %v3023 = vmax.f32 %v2963, 0.0
        %v3024 = vmax.f32 %v2966, 0.0
        %v3025 = vmax.f32 %v2968, 0.0
        %v3026 = vmax.f32 %v2971, 0.0
        %v3027 = vmax.f32 %v2973, 0.0
        %v3028 = vmax.f32 %v2976, 0.0
        %v3029 = vmax.f32 %v2978, 0.0
        %v3030 = vmax.f32 %v2981, 0.0
        %v3031 = vmax.f32 %v2983, 0.0
        %v3032 = vmax.f32 %v2986, 0.0
        %v3033 = vmax.f32 %v2988, 0.0
        %v3034 = vmax.f32 %v2991, 0.0
        %v3035 = vmax.f32 %v2993, 0.0
        %v3036 = vmax.f32 %v2996, 0.0
        %v3037 = vmax.f32 %v2998, 0.0
        %v3038 = vmax.f32 %v3001, 0.0
        %v3039 = vmax.f32 %v3003, 0.0
        %v3040 = vmax.f32 %v3006, 0.0
        %v3041 = vmax.f32 %v3008, 0.0
        %3042 = vset.pattern.permute.xlu0 7
        %3043 = vperm.xlu0 %3042, %v855
        %v3044 = vpop.permute.xlu0 %3043
        %3046 = vset.pattern.permute.xlu0 7
        %3047 = vperm.xlu0 %3046, %v856
        %v3048 = vpop.permute.xlu0 %3047
        %3050 = vset.pattern.permute.xlu0 7
        %3051 = vperm.xlu0 %3050, %v857
        %v3052 = vpop.permute.xlu0 %3051
        %3054 = vset.pattern.permute.xlu0 7
        %3055 = vperm.xlu0 %3054, %v858
        %v3056 = vpop.permute.xlu0 %3055
        %3058 = vset.pattern.permute.xlu0 7
        %3059 = vperm.xlu0 %3058, %v859
        %v3060 = vpop.permute.xlu0 %3059
        %3062 = vset.pattern.permute.xlu0 7
        %3063 = vperm.xlu0 %3062, %v860
        %v3064 = vpop.permute.xlu0 %3063
        %3066 = vset.pattern.permute.xlu0 7
        %3067 = vperm.xlu0 %3066, %v861
        %v3068 = vpop.permute.xlu0 %3067
        %3070 = vset.pattern.permute.xlu0 7
        %3071 = vperm.xlu0 %3070, %v862
        %v3072 = vpop.permute.xlu0 %3071
        %3074 = vset.pattern.permute.xlu0 7
        %3075 = vperm.xlu0 %3074, %v863
        %v3076 = vpop.permute.xlu0 %3075
        %3078 = vset.pattern.permute.xlu0 7
        %3079 = vperm.xlu0 %3078, %v864
        %v3080 = vpop.permute.xlu0 %3079
        %3082 = vset.pattern.permute.xlu0 7
        %3083 = vperm.xlu0 %3082, %v865
        %v3084 = vpop.permute.xlu0 %3083
        %3086 = vset.pattern.permute.xlu0 7
        %3087 = vperm.xlu0 %3086, %v866
        %v3088 = vpop.permute.xlu0 %3087
        %3090 = vset.pattern.permute.xlu0 7
        %3091 = vperm.xlu0 %3090, %v867
        %v3092 = vpop.permute.xlu0 %3091
        %3094 = vset.pattern.permute.xlu0 7
        %3095 = vperm.xlu0 %3094, %v868
        %v3096 = vpop.permute.xlu0 %3095
        %3098 = vset.pattern.permute.xlu0 7
        %3099 = vperm.xlu0 %3098, %v869
        %v3100 = vpop.permute.xlu0 %3099
        %3102 = vset.pattern.permute.xlu0 7
        %3103 = vperm.xlu0 %3102, %v870
        %v3104 = vpop.permute.xlu0 %3103
        %3106 = vset.pattern.permute.xlu0 7
        %3107 = vperm.xlu0 %3106, %v871
        %v3108 = vpop.permute.xlu0 %3107
        %3110 = vset.pattern.permute.xlu0 7
        %3111 = vperm.xlu0 %3110, %v872
        %v3112 = vpop.permute.xlu0 %3111
        %3114 = vset.pattern.permute.xlu0 7
        %3115 = vperm.xlu0 %3114, %v873
        %v3116 = vpop.permute.xlu0 %3115
        %3118 = vset.pattern.permute.xlu0 7
        %3119 = vperm.xlu0 %3118, %v874
        %v3120 = vpop.permute.xlu0 %3119
        %3122 = vset.pattern.permute.xlu0 7
        %3123 = vperm.xlu0 %3122, %v875
        %v3124 = vpop.permute.xlu0 %3123
        %3126 = vset.pattern.permute.xlu0 7
        %3127 = vperm.xlu0 %3126, %v876
        %v3128 = vpop.permute.xlu0 %3127
        %3130 = vset.pattern.permute.xlu0 7
        %3131 = vperm.xlu0 %3130, %v877
        %v3132 = vpop.permute.xlu0 %3131
        %3134 = vset.pattern.permute.xlu0 7
        %3135 = vperm.xlu0 %3134, %v878
        %v3136 = vpop.permute.xlu0 %3135
        %3138 = vset.pattern.permute.xlu0 7
        %3139 = vperm.xlu0 %3138, %v629
        %v3140 = vpop.permute.xlu0 %3139
        %3142 = vset.pattern.permute.xlu0 7
        %3143 = vperm.xlu0 %3142, %v630
        %v3144 = vpop.permute.xlu0 %3143
        %3146 = vset.pattern.permute.xlu0 7
        %3147 = vperm.xlu0 %3146, %v631
        %v3148 = vpop.permute.xlu0 %3147
        %3150 = vset.pattern.permute.xlu0 7
        %3151 = vperm.xlu0 %3150, %v632
        %v3152 = vpop.permute.xlu0 %3151
        %3154 = vset.pattern.permute.xlu0 7
        %3155 = vperm.xlu0 %3154, %v633
        %v3156 = vpop.permute.xlu0 %3155
        %3158 = vset.pattern.permute.xlu0 7
        %3159 = vperm.xlu0 %3158, %v634
        %v3160 = vpop.permute.xlu0 %3159
        %3162 = vset.pattern.permute.xlu0 7
        %3163 = vperm.xlu0 %3162, %v635
        %v3164 = vpop.permute.xlu0 %3163
        %3166 = vset.pattern.permute.xlu0 7
        %3167 = vperm.xlu0 %3166, %v636
        %v3168 = vpop.permute.xlu0 %3167
        %v3170 = vmul.f32 %v3010, %v3044
        %v3171 = vmul.f32 %v3011, %v3048
        %v3172 = vmul.f32 %v3012, %v3052
        %v3173 = vmul.f32 %v3013, %v3056
        %v3174 = vmul.f32 %v3014, %v3060
        %v3175 = vmul.f32 %v3015, %v3064
        %v3176 = vmul.f32 %v3016, %v3068
        %v3177 = vmul.f32 %v3017, %v3072
        %v3178 = vmul.f32 %v3018, %v3076
        %v3179 = vmul.f32 %v3019, %v3080
        %v3180 = vmul.f32 %v3020, %v3084
        %v3181 = vmul.f32 %v3021, %v3088
        %v3182 = vmul.f32 %v3022, %v3092
        %v3183 = vmul.f32 %v3023, %v3096
        %v3184 = vmul.f32 %v3024, %v3100
        %v3185 = vmul.f32 %v3025, %v3104
        %v3186 = vmul.f32 %v3026, %v3108
        %v3187 = vmul.f32 %v3027, %v3112
        %v3188 = vmul.f32 %v3028, %v3116
        %v3189 = vmul.f32 %v3029, %v3120
        %v3190 = vmul.f32 %v3030, %v3124
        %v3191 = vmul.f32 %v3031, %v3128
        %v3192 = vmul.f32 %v3032, %v3132
        %v3193 = vmul.f32 %v3033, %v3136
        %v3194 = vmul.f32 %v3034, %v3140
        %v3195 = vmul.f32 %v3035, %v3144
        %v3196 = vmul.f32 %v3036, %v3148
        %v3197 = vmul.f32 %v3037, %v3152
        %v3198 = vmul.f32 %v3038, %v3156
        %v3199 = vmul.f32 %v3039, %v3160
        %v3200 = vmul.f32 %v3040, %v3164
        %v3201 = vmul.f32 %v3041, %v3168
        %v3202 = vadd.f32 %v3170, %v3171
        %v3203 = vadd.f32 %v3202, %v3172
        %v3204 = vadd.f32 %v3203, %v3173
        %v3205 = vadd.f32 %v3204, %v3174
        %v3206 = vadd.f32 %v3205, %v3175
        %v3207 = vadd.f32 %v3206, %v3176
        %v3208 = vadd.f32 %v3207, %v3177
        %v3209 = vrot.slane %v3208, 4
        %v3210 = vadd.f32 %v3208, %v3209
        %v3211 = vrot.slane %v3210, 2
        %v3212 = vadd.f32 %v3210, %v3211
        %v3213 = vrot.slane %v3212, 1
        %v3214 = vadd.f32 %v3212, %v3213
        %v3215 = vadd.f32 %v3178, %v3179
        %v3216 = vadd.f32 %v3215, %v3180
        %v3217 = vadd.f32 %v3216, %v3181
        %v3218 = vadd.f32 %v3217, %v3182
        %v3219 = vadd.f32 %v3218, %v3183
        %v3220 = vadd.f32 %v3219, %v3184
        %v3221 = vadd.f32 %v3220, %v3185
        %v3222 = vrot.slane %v3221, 4
        %v3223 = vadd.f32 %v3221, %v3222
        %v3224 = vrot.slane %v3223, 2
        %v3225 = vadd.f32 %v3223, %v3224
        %v3226 = vrot.slane %v3225, 1
        %v3227 = vadd.f32 %v3225, %v3226
        %v3228 = vadd.f32 %v3186, %v3187
        %v3229 = vadd.f32 %v3228, %v3188
        %v3230 = vadd.f32 %v3229, %v3189
        %v3231 = vadd.f32 %v3230, %v3190
        %v3232 = vadd.f32 %v3231, %v3191
        %v3233 = vadd.f32 %v3232, %v3192
        %v3234 = vadd.f32 %v3233, %v3193
        %v3235 = vrot.slane %v3234, 4
        %v3236 = vadd.f32 %v3234, %v3235
        %v3237 = vrot.slane %v3236, 2
        %v3238 = vadd.f32 %v3236, %v3237
        %v3239 = vrot.slane %v3238, 1
        %v3240 = vadd.f32 %v3238, %v3239
        %v3241 = vadd.f32 %v3194, %v3195
        %v3242 = vadd.f32 %v3241, %v3196
        %v3243 = vadd.f32 %v3242, %v3197
        %v3244 = vadd.f32 %v3243, %v3198
        %v3245 = vadd.f32 %v3244, %v3199
        %v3246 = vadd.f32 %v3245, %v3200
        %v3247 = vadd.f32 %v3246, %v3201
        %v3248 = vrot.slane %v3247, 4
        %v3249 = vadd.f32 %v3247, %v3248
        %v3250 = vrot.slane %v3249, 2
        %v3251 = vadd.f32 %v3249, %v3250
        %v3252 = vrot.slane %v3251, 1
        %v3253 = vadd.f32 %v3251, %v3252
        %v3254 = vld [vmem:[%s1] sm:$0xf]
        %3256 = vset.pattern.permute.xlu0 8
        %3257 = vperm.xlu0 %3256, %v3254
        %v3258 = vpop.permute.xlu0 %3257
        %v3259 = vrot.slane %v3258, 1
        %v3260 = vrot.slane %v3258, 2
        %v3261 = vrot.slane %v3258, 3
        %v3266 = vadd.f32 %v3214, %v3258
        %v3267 = vadd.f32 %v3227, %v3259
        %v3268 = vadd.f32 %v3240, %v3260
        %v3269 = vadd.f32 %v3253, %v3261
        %v3274 = vrot.slane %v3267, 7
        %vm3275 = vcmask 1041409
        %v3276 = vsel %vm3275, %v3274, %v3266
        %v3277 = vrot.slane %v3268, 6
        %vm3278 = vcmask 1042434
        %v3279 = vsel %vm3278, %v3277, %v3276
        %v3280 = vrot.slane %v3269, 5
        %vm3281 = vcmask 1043459
        %v3282 = vsel %vm3281, %v3280, %v3279
        %3284 = vst [vmem:[%s178] sm:$0xf] %v3282
        %s3285 = sand.u32 %s94, 1
        %s3286 = scalar_lea.sflag [#allocation4], %s3285
        %s3287 = sand.u32 %s94, 1
        %s3288 = smul.addr %s3287, 4
        %s3289 = scalar_lea.vmem [#allocation5], %s3288
        // Predicated region
        $region37: #{tpu_custom_call.1} parent=31 // pred_check
          %p3290 = pneg %p104
        $region38: #{tpu_custom_call.1} parent=31 // pred_check_branch
          %3292 = sbr.rel (%p3290) target = $region40
        $region39: #{tpu_custom_call.1} parent=31 // pred_region
          %3294 = vsyncadd %s3286, 0
          %s3295 = smul.addr %s18, 4
          %s3296 = scalar_lea.hbm %s3, %s3295
          %s3298 = sshll.u32 %s3289, 4
          %s3299 = int_to_ptr.vmem [resolvable:$true] %s3298
          %s3300 = sshll.u32 %s3296, 4
          %s3301 = int_to_ptr.hbm [resolvable:$true] %s3300
          %3303 = dma.vmem_to_hbm [thread:$0]  %s3299, 64, %s3301, %s3286
        $region40: #{tpu_custom_call.1} parent=31 // pred_fallthru
          _
      $region32: #{tpu_custom_call.1} parent=5 // pred_fallthru
        _
      %p3304 = scmp.le.s32.totalorder 2, %s13
      // Predicated region
      $region41: #{tpu_custom_call.1} parent=5 // pred_check
        %p3305 = pneg %p3304
      $region42: #{tpu_custom_call.1} parent=5 // pred_check_branch
        %3307 = sbr.rel (%p3305) target = $region44
      $region43: #{tpu_custom_call.1} parent=5 // pred_region
        %s3308 = ssub.s32 %s13, 2
        // Predicated region
        $region45: #{tpu_custom_call.1} parent=43 // pred_check
          %p3309 = pneg %p110
        $region46: #{tpu_custom_call.1} parent=43 // pred_check_branch
          %3311 = sbr.rel (%p3309) target = $region48
        $region47: #{tpu_custom_call.1} parent=43 // pred_region
          %s3312 = sand.u32 %s95, 1
          %s3313 = scalar_lea.sflag [#allocation4], %s3312
          %s3314 = sand.u32 %s95, 1
          %s3315 = smul.addr %s3314, 4
          %s3316 = scalar_lea.vmem [#allocation5], %s3315
          %3318 = dma.done %s3313, 64
        $region48: #{tpu_custom_call.1} parent=43 // pred_fallthru
          _
      $region44: #{tpu_custom_call.1} parent=5 // pred_fallthru
        _
    $region6: #{tpu_custom_call.1} parent=1 // loop_footer
      %s17 = sadd.s32 1, %s13
    $region7: #{tpu_custom_call.1} parent=1 // loop_footer_branch
      %12 = sbr.rel target = $region3
    $region8: #{tpu_custom_call.1} parent=1 // loop_exit
      _
    %3319 = vsyncpa [#allocation3], 1
    %s3320 = scalar_lea.sflag [#allocation3], 1
    %3321 = vsyncpa %s3320, 1
    %3322 = vsyncpa [#allocation4], 1
    %s3323 = scalar_lea.sflag [#allocation4], 1
    %3324 = vsyncpa %s3323, 1

</llo_original>
